<compile_context>
chip_gen: v7x
topology: tpu7x:2x2x1
jax: 0.10.0
libtpu: 0.0.40
codegen_flags: <defaults>
</compile_context>

<pallas_src>
import numpy as np
import jax
import jax.numpy as jnp
from jax.experimental import pallas as pl
from jax.experimental.pallas import tpu as pltpu

GROUPS = (2, 4, 8, 16)   # group counts of fc1..fc4 / fc5..fc8
N_BRANCH = 4             # branches per SelectBlock
N_HALF = 2               # every group pattern nests inside the g=2 "half" super-blocks
SEL_PAD = 8              # SelectBlock conv columns padded 4 -> 8 (zero pad)
EPS = 1e-15


# ---------------------------------------------------------------------------
# Shared math helpers (used by BOTH the Pallas kernel and the JAX reference so
# the flip-sensitive floor/ceil branch selection sees identical operands).
# ---------------------------------------------------------------------------
def _relu(t):
    return jnp.maximum(t, 0.0)


def _sigmoid(t):
    return 1.0 / (1.0 + jnp.exp(-t))


def _select_coeffs(off):
    """SelectBlock gather -> per-branch mixing coefficients (exact reformulation).

    off: (B, N_BRANCH) raw 1x1-conv outputs of the SelectBlock (no bias).
    Returns N_BRANCH (B, 1) coefficients c_j with sum_j c_j * branch_j == SelectBlock(...).
    fl/ce are exact small integers from floor/ceil of f32 values, so the exact float
    comparisons below are safe.
    """
    off = off - jnp.min(off, axis=1, keepdims=True) + EPS
    off = off / jnp.max(off, axis=1, keepdims=True) * (N_BRANCH - 1)
    fl = jnp.floor(off)
    ce = jnp.ceil(off)
    mo = off - fl                                    # min_offset (pre-softmax)
    Mo = ce - off                                    # max_offset (pre-softmax)
    m_all = jnp.maximum(jnp.max(mo, axis=1, keepdims=True),
                        jnp.max(Mo, axis=1, keepdims=True))
    e_min = jnp.exp(mo - m_all)
    e_max = jnp.exp(Mo - m_all)
    inv = 1.0 / (jnp.sum(e_min, axis=1, keepdims=True)
                 + jnp.sum(e_max, axis=1, keepdims=True))
    wmin = e_min * inv
    wmax = e_max * inv
    coeffs = []
    for j in range(N_BRANCH):
        coeffs.append(jnp.sum(jnp.where(fl == float(j), wmin, 0.0)
                              + jnp.where(ce == float(j), wmax, 0.0),
                              axis=1, keepdims=True))          # (B, 1)
    return coeffs


def _stage_compute(origin_halves, w_halves, b_halves, act):
    """One grouped-FC + SelectBlock stage on per-half data.

    origin_halves: N_HALF x (B, half) f32
    w_halves:      N_HALF x (half, 4*half + SEL_PAD) bf16 fused weights
    b_halves:      N_HALF x (1,    4*half + SEL_PAD) f32  fused biases
    act:           relu (stage 0) or sigmoid (stage 1) -- only this one is evaluated
    Returns N_HALF x (B, half) f32 mixed outputs.
    """
    half = origin_halves[0].shape[1]
    sel0 = N_BRANCH * half
    r = []
    for h in range(N_HALF):
        rh = jnp.dot(origin_halves[h].astype(jnp.bfloat16), w_halves[h],
                     preferred_element_type=jnp.float32)       # (B, 4*half + SEL_PAD)
        r.append(rh + b_halves[h])
    off = r[0][:, sel0:sel0 + N_BRANCH]
    for h in range(1, N_HALF):
        off = off + r[h][:, sel0:sel0 + N_BRANCH]              # (B, 4)
    coeffs = _select_coeffs(off)
    mixed = []
    for h in range(N_HALF):
        acc = coeffs[0] * act(r[h][:, 0:half])
        for j in range(1, N_BRANCH):
            acc = acc + coeffs[j] * act(r[h][:, j * half:(j + 1) * half])
        mixed.append(acc)                                      # (B, half)
    return mixed


# ---------------------------------------------------------------------------
# Pallas kernel (single invocation: both stages back-to-back, all weights resident)
# ---------------------------------------------------------------------------
def _sgfc_kernel(origin_ref, xv_ref, w_ref, b_ref, out_ref):
    # origin_ref: (B, HW) f32        hoisted mean_c + max_c of the (b, h*w, c) view
    # xv_ref    : (B, C, HW) f32     natural NC(HW) view for the final modulation
    # w_ref     : (2, N_HALF, HW/2, 4*HW/2 + SEL_PAD) bf16 fused weights (both stages)
    # b_ref     : (2, N_HALF, 1,    4*HW/2 + SEL_PAD) f32  fused biases
    # out_ref   : (B, C, HW) f32
    half = w_ref.shape[2]
    origin = origin_ref[...]
    y_halves = [origin[:, h * half:(h + 1) * half] for h in range(N_HALF)]

    temp = _stage_compute(y_halves,
                          [w_ref[0, h] for h in range(N_HALF)],
                          [b_ref[0, h] for h in range(N_HALF)],
                          _relu)
    att = _stage_compute(temp,
                         [w_ref[1, h] for h in range(N_HALF)],
                         [b_ref[1, h] for h in range(N_HALF)],
                         _sigmoid)

    for h in range(N_HALF):
        out_ref[:, :, h * half:(h + 1) * half] = (
            xv_ref[:, :, h * half:(h + 1) * half] * att[h][:, None, :])


def select_group_fc_forward(x, packed):
    b, c, h, w = x.shape
    hw = h * w
    wf, bff = packed
    n_stage, n_half, half, d_out = wf.shape
    assert n_stage == 2 and n_half == N_HALF and n_half * half == hw

    # Module quirk: y = x.reshape(b, h*w, c) reinterprets NCHW memory (not a channel
    # transpose).  The mean+max "origin" reduce is hoisted out of the kernel.
    yv = x.reshape(b, hw, c)
    origin = jnp.mean(yv, axis=2) + jnp.max(yv, axis=2)        # (b, hw) f32
    xv = x.reshape(b, c, hw)

    out = pl.pallas_call(
        _sgfc_kernel,
        out_shape=jax.ShapeDtypeStruct((b, c, hw), x.dtype),
        grid=(1,),
        in_specs=[
            pl.BlockSpec((b, hw), lambda i: (0, 0)),                            # origin
            pl.BlockSpec((b, c, hw), lambda i: (0, 0, 0)),                      # x view
            pl.BlockSpec((n_stage, n_half, half, d_out), lambda i: (0, 0, 0, 0)),   # W
            pl.BlockSpec((n_stage, n_half, 1, d_out), lambda i: (0, 0, 0, 0)),      # b
        ],
        out_specs=pl.BlockSpec((b, c, hw), lambda i: (0, 0, 0)),
        compiler_params=pltpu.CompilerParams(dimension_semantics=("arbitrary",)),
    )(origin, xv, wf, bff)
    return out.reshape(b, c, h, w)


# ---------------------------------------------------------------------------
# Plain-JAX reference built from the SAME packed weights and shared helpers.
# ---------------------------------------------------------------------------
def packed_reference_forward(x, packed):
    b, c, h, w = x.shape
    hw = h * w
    wf, bff = packed
    half = wf.shape[2]
    yv = x.reshape(b, hw, c)
    origin = jnp.mean(yv, axis=2) + jnp.max(yv, axis=2)
    y_halves = [origin[:, hh * half:(hh + 1) * half] for hh in range(N_HALF)]
    temp = _stage_compute(y_halves,
                          [wf[0, hh] for hh in range(N_HALF)],
                          [bff[0, hh] for hh in range(N_HALF)],
                          _relu)
    att = _stage_compute(temp,
                         [wf[1, hh] for hh in range(N_HALF)],
                         [bff[1, hh] for hh in range(N_HALF)],
                         _sigmoid)
    att_full = jnp.concatenate(att, axis=1)                    # (b, hw)
    return (att_full[:, None, :] * x.reshape(b, c, hw)).reshape(b, c, h, w)


# ---------------------------------------------------------------------------
# Deterministic parameter setup (synthetic, matches module shapes) + packing
# ---------------------------------------------------------------------------
def init_params(channel, key):
    keys = jax.random.split(key, 18)
    ki = 0
    w_relu, b_relu, w_sig, b_sig = [], [], [], []
    for g in GROUPS:
        fan_in = channel // g
        w_relu.append(jax.random.normal(keys[ki], (channel, fan_in), jnp.float32)
                      / np.sqrt(fan_in)); ki += 1
        b_relu.append(jax.random.normal(keys[ki], (channel,), jnp.float32) * 0.1); ki += 1
    wsel1 = jax.random.normal(keys[ki], (N_BRANCH, channel), jnp.float32) / np.sqrt(channel); ki += 1
    for g in GROUPS:
        fan_in = channel // g
        w_sig.append(jax.random.normal(keys[ki], (channel, fan_in), jnp.float32)
                     / np.sqrt(fan_in)); ki += 1
        b_sig.append(jax.random.normal(keys[ki], (channel,), jnp.float32) * 0.1); ki += 1
    wsel2 = jax.random.normal(keys[ki], (N_BRANCH, channel), jnp.float32) / np.sqrt(channel); ki += 1
    return dict(w_relu=w_relu, b_relu=b_relu, wsel1=wsel1,
                w_sig=w_sig, b_sig=b_sig, wsel2=wsel2)


def pack_params_numpy(p, channel, dtype=np.float64):
    """Pack grouped Conv1d + SelectBlock weights into the fused per-half layout.

    Every group pattern (2/4/8/16) nests inside the g=2 halves, so only the two
    (half, half) diagonal super-blocks per branch are stored, fused along the output
    dim across the 4 branches plus SEL_PAD SelectBlock columns (4 real, rest zero):
      W[stage, h, c, j*half + k]    = branch-j weight (out = h*half+k, in = h*half+c)
      W[stage, h, c, 4*half + k<4]  = SelectBlock 1x1-conv weight
      B[stage, h, 0, j*half + k]    = branch-j bias for output h*half+k
    """
    half = channel // N_HALF
    d_out = N_BRANCH * half + SEL_PAD

    def dense_t(wg, groups):
        cg = channel // groups
        d = np.zeros((channel, channel), dtype=dtype)
        wg = np.asarray(wg, dtype=dtype)
        for g in range(groups):
            d[g * cg:(g + 1) * cg, g * cg:(g + 1) * cg] = wg[g * cg:(g + 1) * cg, :]
        return d.T                                             # (in, out)

    def fuse_stage(w_list, b_list, wsel):
        Wf = np.zeros((N_HALF, half, d_out), dtype=dtype)
        Bf = np.zeros((N_HALF, 1, d_out), dtype=dtype)
        for j, (wg, groups) in enumerate(zip(w_list, GROUPS)):
            dt = dense_t(wg, groups)
            bj = np.asarray(b_list[j], dtype=dtype)
            for h in range(N_HALF):
                Wf[h, :, j * half:(j + 1) * half] = dt[h * half:(h + 1) * half,
                                                       h * half:(h + 1) * half]
                Bf[h, 0, j * half:(j + 1) * half] = bj[h * half:(h + 1) * half]
        ws = np.asarray(wsel, dtype=dtype)                     # (N_BRANCH, channel)
        for h in range(N_HALF):
            Wf[h, :, N_BRANCH * half:N_BRANCH * half + N_BRANCH] = \
                ws[:, h * half:(h + 1) * half].T
        return Wf, Bf

    W1, B1 = fuse_stage(p['w_relu'], p['b_relu'], p['wsel1'])
    W2, B2 = fuse_stage(p['w_sig'], p['b_sig'], p['wsel2'])
    return np.stack([W1, W2]), np.stack([B1, B2])


# ---------------------------------------------------------------------------
# Float64 NumPy references: faithful torch-module port vs. packed/fused math.
# ---------------------------------------------------------------------------
def _np_module_forward(x, p):
    b, c, h, w = x.shape
    hw = h * w
    y = x.reshape(b, hw, c)
    y = y.mean(axis=2) + y.max(axis=2)

    def grouped(v, wg, bias, groups, act):
        cg = hw // groups
        out = np.zeros((b, hw), dtype=np.float64)
        wg = np.asarray(wg, np.float64)
        bias = np.asarray(bias, np.float64)
        for g in range(groups):
            out[:, g * cg:(g + 1) * cg] = (v[:, g * cg:(g + 1) * cg]
                                           @ wg[g * cg:(g + 1) * cg, :].T
                                           + bias[g * cg:(g + 1) * cg])
        return act(out)

    def select(origin, branches, wsel):
        wsel = np.asarray(wsel, np.float64)
        off = origin @ wsel.T
        off = off - off.min(axis=1, keepdims=True) + EPS
        off = off / off.max(axis=1, keepdims=True) * (N_BRANCH - 1)
        fl = np.floor(off)
        ce = np.ceil(off)
        cat = np.concatenate([off - fl, ce - off], axis=1)
        e = np.exp(cat - cat.max(axis=1, keepdims=True))
        sm = e / e.sum(axis=1, keepdims=True)
        wmin, wmax = sm[:, :N_BRANCH], sm[:, N_BRANCH:]
        res = np.zeros((b, hw), dtype=np.float64)
        for i in range(N_BRANCH):
            gmin = np.take_along_axis(branches, fl[:, i].astype(np.int64)[:, None, None], axis=1)[:, 0]
            gmax = np.take_along_axis(branches, ce[:, i].astype(np.int64)[:, None, None], axis=1)[:, 0]
            res = res + gmin * wmin[:, i:i + 1] + gmax * wmax[:, i:i + 1]
        return res

    relu = lambda t: np.maximum(t, 0.0)
    sigm = lambda t: 1.0 / (1.0 + np.exp(-t))
    z1 = np.stack([grouped(y, p['w_relu'][j], p['b_relu'][j], GROUPS[j], relu)
                   for j in range(N_BRANCH)], axis=1)
    temp = select(y, z1, p['wsel1'])
    z2 = np.stack([grouped(temp, p['w_sig'][j], p['b_sig'][j], GROUPS[j], sigm)
                   for j in range(N_BRANCH)], axis=1)
    att = select(temp, z2, p['wsel2'])
    return att.reshape(b, 1, h, w) * x


def _np_packed_forward(x, Wf, Bf):
    b, c, h, w = x.shape
    hw = h * w
    half = Wf.shape[2]
    sel0 = N_BRANCH * half
    y = x.reshape(b, hw, c)
    origin = y.mean(axis=2) + y.max(axis=2)

    def coeffs_np(off):
        off = off - off.min(axis=1, keepdims=True) + EPS
        off = off / off.max(axis=1, keepdims=True) * (N_BRANCH - 1)
        fl = np.floor(off)
        ce = np.ceil(off)
        cat = np.concatenate([off - fl, ce - off], axis=1)
        e = np.exp(cat - cat.max(axis=1, keepdims=True))
        sm = e / e.sum(axis=1, keepdims=True)
        wmin, wmax = sm[:, :N_BRANCH], sm[:, N_BRANCH:]
        return [((fl == j) * wmin + (ce == j) * wmax).sum(axis=1, keepdims=True)
                for j in range(N_BRANCH)]

    def stage(org, s, act):
        r = [org[:, hh * half:(hh + 1) * half] @ Wf[s, hh] + Bf[s, hh]
             for hh in range(N_HALF)]
        off = r[0][:, sel0:sel0 + N_BRANCH]
        for hh in range(1, N_HALF):
            off = off + r[hh][:, sel0:sel0 + N_BRANCH]
        cs = coeffs_np(off)
        mixed = []
        for hh in range(N_HALF):
            acc = np.zeros((b, half), dtype=np.float64)
            for j in range(N_BRANCH):
                acc = acc + cs[j] * act(r[hh][:, j * half:(j + 1) * half])
            mixed.append(acc)
        return np.concatenate(mixed, axis=1)

    temp = stage(origin, 0, lambda t: np.maximum(t, 0.0))
    att = stage(temp, 1, lambda t: 1.0 / (1.0 + np.exp(-t)))
    return att.reshape(b, 1, h, w) * x


if __name__ == "__main__":
    key = jax.random.PRNGKey(0)
    kx, kp = jax.random.split(key)

    B, C, H, W = 2, 4, 16, 16            # Conv1d "channel" of the module = H*W = 256
    channel = H * W
    x = jax.random.normal(kx, (B, C, H, W), jnp.float32)
    params = init_params(channel, kp)

    # Check 1 (float64 NumPy): packed/fused reformulation == faithful module port.
    x64 = np.asarray(x, dtype=np.float64)
    W64, B64 = pack_params_numpy(params, channel, dtype=np.float64)
    ref_module = _np_module_forward(x64, params)
    ref_packed64 = _np_packed_forward(x64, W64, B64)
    np.testing.assert_allclose(ref_packed64, ref_module, rtol=1e-9, atol=1e-9)

    # Device-side packed weights: bf16 MXU weights, f32 biases.
    packed = (jnp.asarray(W64, dtype=jnp.bfloat16),
              jnp.asarray(B64, dtype=jnp.float32))

    # Run the Pallas kernel.
    out = jax.block_until_ready(select_group_fc_forward(x, packed))

    # Check 2: kernel vs plain-JAX reference built from the same packed weights and
    # the same shared helpers (floor/ceil branch selection cannot diverge spuriously).
    ref = packed_reference_forward(x, packed)
    np.testing.assert_allclose(np.asarray(out), np.asarray(ref), rtol=1e-2, atol=1e-2)
    assert out.shape == x.shape and bool(jnp.all(jnp.isfinite(out)))
    print("KERNEL_OK")
</pallas_src>

<mosaic_0001>
module attributes {stable_mosaic.version = 11 : i64} {
  func.func @_sgfc_kernel(%arg0: i32, %arg1: memref<2x256xf32, #tpu.memory_space<vmem>>, %arg2: memref<2x4x256xf32, #tpu.memory_space<vmem>>, %arg3: memref<2x2x128x520xbf16, #tpu.memory_space<vmem>>, %arg4: memref<2x2x1x520xf32, #tpu.memory_space<vmem>>, %arg5: memref<2x4x256xf32, #tpu.memory_space<vmem>>) attributes {dimension_semantics = [#tpu.dimension_semantics<arbitrary>], iteration_bounds = array<i64: 1>, scalar_prefetch = 0 : i64, scratch_operands = 0 : i64, tpu.core_type = #tpu.core_type<tc>, window_params = [{pipeline_mode = #tpu.pipeline_mode<synchronous>, transform_indices = @transform_0, window_bounds = array<i64: 2, 256>}, {pipeline_mode = #tpu.pipeline_mode<synchronous>, transform_indices = @transform_1, window_bounds = array<i64: 2, 4, 256>}, {pipeline_mode = #tpu.pipeline_mode<synchronous>, transform_indices = @transform_2, window_bounds = array<i64: 2, 2, 128, 520>}, {pipeline_mode = #tpu.pipeline_mode<synchronous>, transform_indices = @transform_3, window_bounds = array<i64: 2, 2, 1, 520>}, {pipeline_mode = #tpu.pipeline_mode<synchronous>, transform_indices = @transform_4, window_bounds = array<i64: 2, 4, 256>}]} {
    %c0 = arith.constant 0 : index
    %c0_0 = arith.constant 0 : index
    %0 = vector.load %arg1[%c0, %c0_0] : memref<2x256xf32, #tpu.memory_space<vmem>>, vector<2x256xf32>
    %1 = vector.extract_strided_slice %0 {offsets = [0, 0], sizes = [2, 128], strides = [1, 1]} : vector<2x256xf32> to vector<2x128xf32>
    %2 = vector.extract_strided_slice %0 {offsets = [0, 128], sizes = [2, 128], strides = [1, 1]} : vector<2x256xf32> to vector<2x128xf32>
    %c0_1 = arith.constant 0 : index
    %c0_2 = arith.constant 0 : index
    %c0_3 = arith.constant 0 : index
    %c0_4 = arith.constant 0 : index
    %3 = vector.load %arg3[%c0_1, %c0_2, %c0_3, %c0_4] : memref<2x2x128x520xbf16, #tpu.memory_space<vmem>>, vector<1x1x128x520xbf16>
    %4 = vector.shape_cast %3 : vector<1x1x128x520xbf16> to vector<128x520xbf16>
    %c0_5 = arith.constant 0 : index
    %c1 = arith.constant 1 : index
    %c0_6 = arith.constant 0 : index
    %c0_7 = arith.constant 0 : index
    %5 = vector.load %arg3[%c0_5, %c1, %c0_6, %c0_7] : memref<2x2x128x520xbf16, #tpu.memory_space<vmem>>, vector<1x1x128x520xbf16>
    %6 = vector.shape_cast %5 : vector<1x1x128x520xbf16> to vector<128x520xbf16>
    %c0_8 = arith.constant 0 : index
    %c0_9 = arith.constant 0 : index
    %c0_10 = arith.constant 0 : index
    %c0_11 = arith.constant 0 : index
    %7 = vector.load %arg4[%c0_8, %c0_9, %c0_10, %c0_11] : memref<2x2x1x520xf32, #tpu.memory_space<vmem>>, vector<1x1x1x520xf32>
    %8 = vector.shape_cast %7 : vector<1x1x1x520xf32> to vector<1x520xf32>
    %c0_12 = arith.constant 0 : index
    %c1_13 = arith.constant 1 : index
    %c0_14 = arith.constant 0 : index
    %c0_15 = arith.constant 0 : index
    %9 = vector.load %arg4[%c0_12, %c1_13, %c0_14, %c0_15] : memref<2x2x1x520xf32, #tpu.memory_space<vmem>>, vector<1x1x1x520xf32>
    %10 = vector.shape_cast %9 : vector<1x1x1x520xf32> to vector<1x520xf32>
    %11 = arith.truncf %1 : vector<2x128xf32> to vector<2x128xbf16>
    %cst = arith.constant dense<0.000000e+00> : vector<2x520xf32>
    %12 = tpu.matmul %11, %4, %cst {dimension_numbers = #tpu.dot_dimension_numbers<[1], [0], [0], [1], [0, 0, 1, 1], [], []>} : vector<2x128xbf16>, vector<128x520xbf16>, vector<2x520xf32> -> vector<2x520xf32>
    %13 = vector.broadcast %8 : vector<1x520xf32> to vector<2x520xf32>
    %14 = arith.addf %12, %13 : vector<2x520xf32>
    %15 = arith.truncf %2 : vector<2x128xf32> to vector<2x128xbf16>
    %cst_16 = arith.constant dense<0.000000e+00> : vector<2x520xf32>
    %16 = tpu.matmul %15, %6, %cst_16 {dimension_numbers = #tpu.dot_dimension_numbers<[1], [0], [0], [1], [0, 0, 1, 1], [], []>} : vector<2x128xbf16>, vector<128x520xbf16>, vector<2x520xf32> -> vector<2x520xf32>
    %17 = vector.broadcast %10 : vector<1x520xf32> to vector<2x520xf32>
    %18 = arith.addf %16, %17 : vector<2x520xf32>
    %19 = vector.extract_strided_slice %14 {offsets = [0, 512], sizes = [2, 4], strides = [1, 1]} : vector<2x520xf32> to vector<2x4xf32>
    %20 = vector.extract_strided_slice %18 {offsets = [0, 512], sizes = [2, 4], strides = [1, 1]} : vector<2x520xf32> to vector<2x4xf32>
    %21 = arith.addf %19, %20 : vector<2x4xf32>
    %cst_17 = arith.constant dense<0x7F800000> : vector<2xf32>
    %22 = vector.multi_reduction <minimumf>, %21, %cst_17 [1] : vector<2x4xf32> to vector<2xf32>
    %23 = vector.shape_cast %22 : vector<2xf32> to vector<2x1xf32>
    %24 = vector.broadcast %23 : vector<2x1xf32> to vector<2x4xf32>
    %25 = arith.subf %21, %24 : vector<2x4xf32>
    %cst_18 = arith.constant 1.000000e-15 : f32
    %26 = vector.broadcast %cst_18 : f32 to vector<2x4xf32>
    %27 = arith.addf %25, %26 : vector<2x4xf32>
    %cst_19 = arith.constant dense<0xFF800000> : vector<2xf32>
    %28 = vector.multi_reduction <maximumf>, %27, %cst_19 [1] : vector<2x4xf32> to vector<2xf32>
    %29 = vector.shape_cast %28 : vector<2xf32> to vector<2x1xf32>
    %30 = vector.broadcast %29 : vector<2x1xf32> to vector<2x4xf32>
    %31 = arith.divf %27, %30 : vector<2x4xf32>
    %cst_20 = arith.constant 3.000000e+00 : f32
    %32 = vector.broadcast %cst_20 : f32 to vector<2x4xf32>
    %33 = arith.mulf %31, %32 : vector<2x4xf32>
    %34 = math.floor %33 : vector<2x4xf32>
    %35 = math.ceil %33 : vector<2x4xf32>
    %36 = arith.subf %33, %34 : vector<2x4xf32>
    %37 = arith.subf %35, %33 : vector<2x4xf32>
    %cst_21 = arith.constant dense<0xFF800000> : vector<2xf32>
    %38 = vector.multi_reduction <maximumf>, %36, %cst_21 [1] : vector<2x4xf32> to vector<2xf32>
    %39 = vector.shape_cast %38 : vector<2xf32> to vector<2x1xf32>
    %cst_22 = arith.constant dense<0xFF800000> : vector<2xf32>
    %40 = vector.multi_reduction <maximumf>, %37, %cst_22 [1] : vector<2x4xf32> to vector<2xf32>
    %41 = vector.shape_cast %40 : vector<2xf32> to vector<2x1xf32>
    %42 = arith.maximumf %39, %41 : vector<2x1xf32>
    %43 = vector.broadcast %42 : vector<2x1xf32> to vector<2x4xf32>
    %44 = arith.subf %36, %43 : vector<2x4xf32>
    %45 = math.exp %44 : vector<2x4xf32>
    %46 = vector.broadcast %42 : vector<2x1xf32> to vector<2x4xf32>
    %47 = arith.subf %37, %46 : vector<2x4xf32>
    %48 = math.exp %47 : vector<2x4xf32>
    %cst_23 = arith.constant dense<0.000000e+00> : vector<2xf32>
    %49 = vector.multi_reduction <add>, %45, %cst_23 [1] : vector<2x4xf32> to vector<2xf32>
    %50 = vector.shape_cast %49 : vector<2xf32> to vector<2x1xf32>
    %cst_24 = arith.constant dense<0.000000e+00> : vector<2xf32>
    %51 = vector.multi_reduction <add>, %48, %cst_24 [1] : vector<2x4xf32> to vector<2xf32>
    %52 = vector.shape_cast %51 : vector<2xf32> to vector<2x1xf32>
    %53 = arith.addf %50, %52 : vector<2x1xf32>
    %cst_25 = arith.constant 1.000000e+00 : f32
    %54 = vector.broadcast %cst_25 : f32 to vector<2x1xf32>
    %55 = arith.divf %54, %53 : vector<2x1xf32>
    %56 = vector.broadcast %55 : vector<2x1xf32> to vector<2x4xf32>
    %57 = arith.mulf %45, %56 : vector<2x4xf32>
    %58 = vector.broadcast %55 : vector<2x1xf32> to vector<2x4xf32>
    %59 = arith.mulf %48, %58 : vector<2x4xf32>
    %cst_26 = arith.constant 0.000000e+00 : f32
    %60 = vector.broadcast %cst_26 : f32 to vector<2x4xf32>
    %61 = arith.cmpf oeq, %34, %60 : vector<2x4xf32>
    %cst_27 = arith.constant 0.000000e+00 : f32
    %62 = vector.broadcast %cst_27 : f32 to vector<2x4xf32>
    %63 = arith.select %61, %57, %62 : vector<2x4xi1>, vector<2x4xf32>
    %cst_28 = arith.constant 0.000000e+00 : f32
    %64 = vector.broadcast %cst_28 : f32 to vector<2x4xf32>
    %65 = arith.cmpf oeq, %35, %64 : vector<2x4xf32>
    %cst_29 = arith.constant 0.000000e+00 : f32
    %66 = vector.broadcast %cst_29 : f32 to vector<2x4xf32>
    %67 = arith.select %65, %59, %66 : vector<2x4xi1>, vector<2x4xf32>
    %68 = arith.addf %63, %67 : vector<2x4xf32>
    %cst_30 = arith.constant dense<0.000000e+00> : vector<2xf32>
    %69 = vector.multi_reduction <add>, %68, %cst_30 [1] : vector<2x4xf32> to vector<2xf32>
    %70 = vector.shape_cast %69 : vector<2xf32> to vector<2x1xf32>
    %cst_31 = arith.constant 1.000000e+00 : f32
    %71 = vector.broadcast %cst_31 : f32 to vector<2x4xf32>
    %72 = arith.cmpf oeq, %34, %71 : vector<2x4xf32>
    %cst_32 = arith.constant 0.000000e+00 : f32
    %73 = vector.broadcast %cst_32 : f32 to vector<2x4xf32>
    %74 = arith.select %72, %57, %73 : vector<2x4xi1>, vector<2x4xf32>
    %cst_33 = arith.constant 1.000000e+00 : f32
    %75 = vector.broadcast %cst_33 : f32 to vector<2x4xf32>
    %76 = arith.cmpf oeq, %35, %75 : vector<2x4xf32>
    %cst_34 = arith.constant 0.000000e+00 : f32
    %77 = vector.broadcast %cst_34 : f32 to vector<2x4xf32>
    %78 = arith.select %76, %59, %77 : vector<2x4xi1>, vector<2x4xf32>
    %79 = arith.addf %74, %78 : vector<2x4xf32>
    %cst_35 = arith.constant dense<0.000000e+00> : vector<2xf32>
    %80 = vector.multi_reduction <add>, %79, %cst_35 [1] : vector<2x4xf32> to vector<2xf32>
    %81 = vector.shape_cast %80 : vector<2xf32> to vector<2x1xf32>
    %cst_36 = arith.constant 2.000000e+00 : f32
    %82 = vector.broadcast %cst_36 : f32 to vector<2x4xf32>
    %83 = arith.cmpf oeq, %34, %82 : vector<2x4xf32>
    %cst_37 = arith.constant 0.000000e+00 : f32
    %84 = vector.broadcast %cst_37 : f32 to vector<2x4xf32>
    %85 = arith.select %83, %57, %84 : vector<2x4xi1>, vector<2x4xf32>
    %cst_38 = arith.constant 2.000000e+00 : f32
    %86 = vector.broadcast %cst_38 : f32 to vector<2x4xf32>
    %87 = arith.cmpf oeq, %35, %86 : vector<2x4xf32>
    %cst_39 = arith.constant 0.000000e+00 : f32
    %88 = vector.broadcast %cst_39 : f32 to vector<2x4xf32>
    %89 = arith.select %87, %59, %88 : vector<2x4xi1>, vector<2x4xf32>
    %90 = arith.addf %85, %89 : vector<2x4xf32>
    %cst_40 = arith.constant dense<0.000000e+00> : vector<2xf32>
    %91 = vector.multi_reduction <add>, %90, %cst_40 [1] : vector<2x4xf32> to vector<2xf32>
    %92 = vector.shape_cast %91 : vector<2xf32> to vector<2x1xf32>
    %cst_41 = arith.constant 3.000000e+00 : f32
    %93 = vector.broadcast %cst_41 : f32 to vector<2x4xf32>
    %94 = arith.cmpf oeq, %34, %93 : vector<2x4xf32>
    %cst_42 = arith.constant 0.000000e+00 : f32
    %95 = vector.broadcast %cst_42 : f32 to vector<2x4xf32>
    %96 = arith.select %94, %57, %95 : vector<2x4xi1>, vector<2x4xf32>
    %cst_43 = arith.constant 3.000000e+00 : f32
    %97 = vector.broadcast %cst_43 : f32 to vector<2x4xf32>
    %98 = arith.cmpf oeq, %35, %97 : vector<2x4xf32>
    %cst_44 = arith.constant 0.000000e+00 : f32
    %99 = vector.broadcast %cst_44 : f32 to vector<2x4xf32>
    %100 = arith.select %98, %59, %99 : vector<2x4xi1>, vector<2x4xf32>
    %101 = arith.addf %96, %100 : vector<2x4xf32>
    %cst_45 = arith.constant dense<0.000000e+00> : vector<2xf32>
    %102 = vector.multi_reduction <add>, %101, %cst_45 [1] : vector<2x4xf32> to vector<2xf32>
    %103 = vector.shape_cast %102 : vector<2xf32> to vector<2x1xf32>
    %104 = vector.extract_strided_slice %14 {offsets = [0, 0], sizes = [2, 128], strides = [1, 1]} : vector<2x520xf32> to vector<2x128xf32>
    %cst_46 = arith.constant 0.000000e+00 : f32
    %105 = vector.broadcast %cst_46 : f32 to vector<2x128xf32>
    %106 = arith.maximumf %104, %105 : vector<2x128xf32>
    %107 = vector.broadcast %70 : vector<2x1xf32> to vector<2x128xf32>
    %108 = arith.mulf %107, %106 : vector<2x128xf32>
    %109 = vector.extract_strided_slice %14 {offsets = [0, 128], sizes = [2, 128], strides = [1, 1]} : vector<2x520xf32> to vector<2x128xf32>
    %cst_47 = arith.constant 0.000000e+00 : f32
    %110 = vector.broadcast %cst_47 : f32 to vector<2x128xf32>
    %111 = arith.maximumf %109, %110 : vector<2x128xf32>
    %112 = vector.broadcast %81 : vector<2x1xf32> to vector<2x128xf32>
    %113 = arith.mulf %112, %111 : vector<2x128xf32>
    %114 = arith.addf %108, %113 : vector<2x128xf32>
    %115 = vector.extract_strided_slice %14 {offsets = [0, 256], sizes = [2, 128], strides = [1, 1]} : vector<2x520xf32> to vector<2x128xf32>
    %cst_48 = arith.constant 0.000000e+00 : f32
    %116 = vector.broadcast %cst_48 : f32 to vector<2x128xf32>
    %117 = arith.maximumf %115, %116 : vector<2x128xf32>
    %118 = vector.broadcast %92 : vector<2x1xf32> to vector<2x128xf32>
    %119 = arith.mulf %118, %117 : vector<2x128xf32>
    %120 = arith.addf %114, %119 : vector<2x128xf32>
    %121 = vector.extract_strided_slice %14 {offsets = [0, 384], sizes = [2, 128], strides = [1, 1]} : vector<2x520xf32> to vector<2x128xf32>
    %cst_49 = arith.constant 0.000000e+00 : f32
    %122 = vector.broadcast %cst_49 : f32 to vector<2x128xf32>
    %123 = arith.maximumf %121, %122 : vector<2x128xf32>
    %124 = vector.broadcast %103 : vector<2x1xf32> to vector<2x128xf32>
    %125 = arith.mulf %124, %123 : vector<2x128xf32>
    %126 = arith.addf %120, %125 : vector<2x128xf32>
    %127 = vector.extract_strided_slice %18 {offsets = [0, 0], sizes = [2, 128], strides = [1, 1]} : vector<2x520xf32> to vector<2x128xf32>
    %cst_50 = arith.constant 0.000000e+00 : f32
    %128 = vector.broadcast %cst_50 : f32 to vector<2x128xf32>
    %129 = arith.maximumf %127, %128 : vector<2x128xf32>
    %130 = vector.broadcast %70 : vector<2x1xf32> to vector<2x128xf32>
    %131 = arith.mulf %130, %129 : vector<2x128xf32>
    %132 = vector.extract_strided_slice %18 {offsets = [0, 128], sizes = [2, 128], strides = [1, 1]} : vector<2x520xf32> to vector<2x128xf32>
    %cst_51 = arith.constant 0.000000e+00 : f32
    %133 = vector.broadcast %cst_51 : f32 to vector<2x128xf32>
    %134 = arith.maximumf %132, %133 : vector<2x128xf32>
    %135 = vector.broadcast %81 : vector<2x1xf32> to vector<2x128xf32>
    %136 = arith.mulf %135, %134 : vector<2x128xf32>
    %137 = arith.addf %131, %136 : vector<2x128xf32>
    %138 = vector.extract_strided_slice %18 {offsets = [0, 256], sizes = [2, 128], strides = [1, 1]} : vector<2x520xf32> to vector<2x128xf32>
    %cst_52 = arith.constant 0.000000e+00 : f32
    %139 = vector.broadcast %cst_52 : f32 to vector<2x128xf32>
    %140 = arith.maximumf %138, %139 : vector<2x128xf32>
    %141 = vector.broadcast %92 : vector<2x1xf32> to vector<2x128xf32>
    %142 = arith.mulf %141, %140 : vector<2x128xf32>
    %143 = arith.addf %137, %142 : vector<2x128xf32>
    %144 = vector.extract_strided_slice %18 {offsets = [0, 384], sizes = [2, 128], strides = [1, 1]} : vector<2x520xf32> to vector<2x128xf32>
    %cst_53 = arith.constant 0.000000e+00 : f32
    %145 = vector.broadcast %cst_53 : f32 to vector<2x128xf32>
    %146 = arith.maximumf %144, %145 : vector<2x128xf32>
    %147 = vector.broadcast %103 : vector<2x1xf32> to vector<2x128xf32>
    %148 = arith.mulf %147, %146 : vector<2x128xf32>
    %149 = arith.addf %143, %148 : vector<2x128xf32>
    %c1_54 = arith.constant 1 : index
    %c0_55 = arith.constant 0 : index
    %c0_56 = arith.constant 0 : index
    %c0_57 = arith.constant 0 : index
    %150 = vector.load %arg3[%c1_54, %c0_55, %c0_56, %c0_57] : memref<2x2x128x520xbf16, #tpu.memory_space<vmem>>, vector<1x1x128x520xbf16>
    %151 = vector.shape_cast %150 : vector<1x1x128x520xbf16> to vector<128x520xbf16>
    %c1_58 = arith.constant 1 : index
    %c1_59 = arith.constant 1 : index
    %c0_60 = arith.constant 0 : index
    %c0_61 = arith.constant 0 : index
    %152 = vector.load %arg3[%c1_58, %c1_59, %c0_60, %c0_61] : memref<2x2x128x520xbf16, #tpu.memory_space<vmem>>, vector<1x1x128x520xbf16>
    %153 = vector.shape_cast %152 : vector<1x1x128x520xbf16> to vector<128x520xbf16>
    %c1_62 = arith.constant 1 : index
    %c0_63 = arith.constant 0 : index
    %c0_64 = arith.constant 0 : index
    %c0_65 = arith.constant 0 : index
    %154 = vector.load %arg4[%c1_62, %c0_63, %c0_64, %c0_65] : memref<2x2x1x520xf32, #tpu.memory_space<vmem>>, vector<1x1x1x520xf32>
    %155 = vector.shape_cast %154 : vector<1x1x1x520xf32> to vector<1x520xf32>
    %c1_66 = arith.constant 1 : index
    %c1_67 = arith.constant 1 : index
    %c0_68 = arith.constant 0 : index
    %c0_69 = arith.constant 0 : index
    %156 = vector.load %arg4[%c1_66, %c1_67, %c0_68, %c0_69] : memref<2x2x1x520xf32, #tpu.memory_space<vmem>>, vector<1x1x1x520xf32>
    %157 = vector.shape_cast %156 : vector<1x1x1x520xf32> to vector<1x520xf32>
    %158 = arith.truncf %126 : vector<2x128xf32> to vector<2x128xbf16>
    %cst_70 = arith.constant dense<0.000000e+00> : vector<2x520xf32>
    %159 = tpu.matmul %158, %151, %cst_70 {dimension_numbers = #tpu.dot_dimension_numbers<[1], [0], [0], [1], [0, 0, 1, 1], [], []>} : vector<2x128xbf16>, vector<128x520xbf16>, vector<2x520xf32> -> vector<2x520xf32>
    %160 = vector.broadcast %155 : vector<1x520xf32> to vector<2x520xf32>
    %161 = arith.addf %159, %160 : vector<2x520xf32>
    %162 = arith.truncf %149 : vector<2x128xf32> to vector<2x128xbf16>
    %cst_71 = arith.constant dense<0.000000e+00> : vector<2x520xf32>
    %163 = tpu.matmul %162, %153, %cst_71 {dimension_numbers = #tpu.dot_dimension_numbers<[1], [0], [0], [1], [0, 0, 1, 1], [], []>} : vector<2x128xbf16>, vector<128x520xbf16>, vector<2x520xf32> -> vector<2x520xf32>
    %164 = vector.broadcast %157 : vector<1x520xf32> to vector<2x520xf32>
    %165 = arith.addf %163, %164 : vector<2x520xf32>
    %166 = vector.extract_strided_slice %161 {offsets = [0, 512], sizes = [2, 4], strides = [1, 1]} : vector<2x520xf32> to vector<2x4xf32>
    %167 = vector.extract_strided_slice %165 {offsets = [0, 512], sizes = [2, 4], strides = [1, 1]} : vector<2x520xf32> to vector<2x4xf32>
    %168 = arith.addf %166, %167 : vector<2x4xf32>
    %cst_72 = arith.constant dense<0x7F800000> : vector<2xf32>
    %169 = vector.multi_reduction <minimumf>, %168, %cst_72 [1] : vector<2x4xf32> to vector<2xf32>
    %170 = vector.shape_cast %169 : vector<2xf32> to vector<2x1xf32>
    %171 = vector.broadcast %170 : vector<2x1xf32> to vector<2x4xf32>
    %172 = arith.subf %168, %171 : vector<2x4xf32>
    %cst_73 = arith.constant 1.000000e-15 : f32
    %173 = vector.broadcast %cst_73 : f32 to vector<2x4xf32>
    %174 = arith.addf %172, %173 : vector<2x4xf32>
    %cst_74 = arith.constant dense<0xFF800000> : vector<2xf32>
    %175 = vector.multi_reduction <maximumf>, %174, %cst_74 [1] : vector<2x4xf32> to vector<2xf32>
    %176 = vector.shape_cast %175 : vector<2xf32> to vector<2x1xf32>
    %177 = vector.broadcast %176 : vector<2x1xf32> to vector<2x4xf32>
    %178 = arith.divf %174, %177 : vector<2x4xf32>
    %cst_75 = arith.constant 3.000000e+00 : f32
    %179 = vector.broadcast %cst_75 : f32 to vector<2x4xf32>
    %180 = arith.mulf %178, %179 : vector<2x4xf32>
    %181 = math.floor %180 : vector<2x4xf32>
    %182 = math.ceil %180 : vector<2x4xf32>
    %183 = arith.subf %180, %181 : vector<2x4xf32>
    %184 = arith.subf %182, %180 : vector<2x4xf32>
    %cst_76 = arith.constant dense<0xFF800000> : vector<2xf32>
    %185 = vector.multi_reduction <maximumf>, %183, %cst_76 [1] : vector<2x4xf32> to vector<2xf32>
    %186 = vector.shape_cast %185 : vector<2xf32> to vector<2x1xf32>
    %cst_77 = arith.constant dense<0xFF800000> : vector<2xf32>
    %187 = vector.multi_reduction <maximumf>, %184, %cst_77 [1] : vector<2x4xf32> to vector<2xf32>
    %188 = vector.shape_cast %187 : vector<2xf32> to vector<2x1xf32>
    %189 = arith.maximumf %186, %188 : vector<2x1xf32>
    %190 = vector.broadcast %189 : vector<2x1xf32> to vector<2x4xf32>
    %191 = arith.subf %183, %190 : vector<2x4xf32>
    %192 = math.exp %191 : vector<2x4xf32>
    %193 = vector.broadcast %189 : vector<2x1xf32> to vector<2x4xf32>
    %194 = arith.subf %184, %193 : vector<2x4xf32>
    %195 = math.exp %194 : vector<2x4xf32>
    %cst_78 = arith.constant dense<0.000000e+00> : vector<2xf32>
    %196 = vector.multi_reduction <add>, %192, %cst_78 [1] : vector<2x4xf32> to vector<2xf32>
    %197 = vector.shape_cast %196 : vector<2xf32> to vector<2x1xf32>
    %cst_79 = arith.constant dense<0.000000e+00> : vector<2xf32>
    %198 = vector.multi_reduction <add>, %195, %cst_79 [1] : vector<2x4xf32> to vector<2xf32>
    %199 = vector.shape_cast %198 : vector<2xf32> to vector<2x1xf32>
    %200 = arith.addf %197, %199 : vector<2x1xf32>
    %cst_80 = arith.constant 1.000000e+00 : f32
    %201 = vector.broadcast %cst_80 : f32 to vector<2x1xf32>
    %202 = arith.divf %201, %200 : vector<2x1xf32>
    %203 = vector.broadcast %202 : vector<2x1xf32> to vector<2x4xf32>
    %204 = arith.mulf %192, %203 : vector<2x4xf32>
    %205 = vector.broadcast %202 : vector<2x1xf32> to vector<2x4xf32>
    %206 = arith.mulf %195, %205 : vector<2x4xf32>
    %cst_81 = arith.constant 0.000000e+00 : f32
    %207 = vector.broadcast %cst_81 : f32 to vector<2x4xf32>
    %208 = arith.cmpf oeq, %181, %207 : vector<2x4xf32>
    %cst_82 = arith.constant 0.000000e+00 : f32
    %209 = vector.broadcast %cst_82 : f32 to vector<2x4xf32>
    %210 = arith.select %208, %204, %209 : vector<2x4xi1>, vector<2x4xf32>
    %cst_83 = arith.constant 0.000000e+00 : f32
    %211 = vector.broadcast %cst_83 : f32 to vector<2x4xf32>
    %212 = arith.cmpf oeq, %182, %211 : vector<2x4xf32>
    %cst_84 = arith.constant 0.000000e+00 : f32
    %213 = vector.broadcast %cst_84 : f32 to vector<2x4xf32>
    %214 = arith.select %212, %206, %213 : vector<2x4xi1>, vector<2x4xf32>
    %215 = arith.addf %210, %214 : vector<2x4xf32>
    %cst_85 = arith.constant dense<0.000000e+00> : vector<2xf32>
    %216 = vector.multi_reduction <add>, %215, %cst_85 [1] : vector<2x4xf32> to vector<2xf32>
    %217 = vector.shape_cast %216 : vector<2xf32> to vector<2x1xf32>
    %cst_86 = arith.constant 1.000000e+00 : f32
    %218 = vector.broadcast %cst_86 : f32 to vector<2x4xf32>
    %219 = arith.cmpf oeq, %181, %218 : vector<2x4xf32>
    %cst_87 = arith.constant 0.000000e+00 : f32
    %220 = vector.broadcast %cst_87 : f32 to vector<2x4xf32>
    %221 = arith.select %219, %204, %220 : vector<2x4xi1>, vector<2x4xf32>
    %cst_88 = arith.constant 1.000000e+00 : f32
    %222 = vector.broadcast %cst_88 : f32 to vector<2x4xf32>
    %223 = arith.cmpf oeq, %182, %222 : vector<2x4xf32>
    %cst_89 = arith.constant 0.000000e+00 : f32
    %224 = vector.broadcast %cst_89 : f32 to vector<2x4xf32>
    %225 = arith.select %223, %206, %224 : vector<2x4xi1>, vector<2x4xf32>
    %226 = arith.addf %221, %225 : vector<2x4xf32>
    %cst_90 = arith.constant dense<0.000000e+00> : vector<2xf32>
    %227 = vector.multi_reduction <add>, %226, %cst_90 [1] : vector<2x4xf32> to vector<2xf32>
    %228 = vector.shape_cast %227 : vector<2xf32> to vector<2x1xf32>
    %cst_91 = arith.constant 2.000000e+00 : f32
    %229 = vector.broadcast %cst_91 : f32 to vector<2x4xf32>
    %230 = arith.cmpf oeq, %181, %229 : vector<2x4xf32>
    %cst_92 = arith.constant 0.000000e+00 : f32
    %231 = vector.broadcast %cst_92 : f32 to vector<2x4xf32>
    %232 = arith.select %230, %204, %231 : vector<2x4xi1>, vector<2x4xf32>
    %cst_93 = arith.constant 2.000000e+00 : f32
    %233 = vector.broadcast %cst_93 : f32 to vector<2x4xf32>
    %234 = arith.cmpf oeq, %182, %233 : vector<2x4xf32>
    %cst_94 = arith.constant 0.000000e+00 : f32
    %235 = vector.broadcast %cst_94 : f32 to vector<2x4xf32>
    %236 = arith.select %234, %206, %235 : vector<2x4xi1>, vector<2x4xf32>
    %237 = arith.addf %232, %236 : vector<2x4xf32>
    %cst_95 = arith.constant dense<0.000000e+00> : vector<2xf32>
    %238 = vector.multi_reduction <add>, %237, %cst_95 [1] : vector<2x4xf32> to vector<2xf32>
    %239 = vector.shape_cast %238 : vector<2xf32> to vector<2x1xf32>
    %cst_96 = arith.constant 3.000000e+00 : f32
    %240 = vector.broadcast %cst_96 : f32 to vector<2x4xf32>
    %241 = arith.cmpf oeq, %181, %240 : vector<2x4xf32>
    %cst_97 = arith.constant 0.000000e+00 : f32
    %242 = vector.broadcast %cst_97 : f32 to vector<2x4xf32>
    %243 = arith.select %241, %204, %242 : vector<2x4xi1>, vector<2x4xf32>
    %cst_98 = arith.constant 3.000000e+00 : f32
    %244 = vector.broadcast %cst_98 : f32 to vector<2x4xf32>
    %245 = arith.cmpf oeq, %182, %244 : vector<2x4xf32>
    %cst_99 = arith.constant 0.000000e+00 : f32
    %246 = vector.broadcast %cst_99 : f32 to vector<2x4xf32>
    %247 = arith.select %245, %206, %246 : vector<2x4xi1>, vector<2x4xf32>
    %248 = arith.addf %243, %247 : vector<2x4xf32>
    %cst_100 = arith.constant dense<0.000000e+00> : vector<2xf32>
    %249 = vector.multi_reduction <add>, %248, %cst_100 [1] : vector<2x4xf32> to vector<2xf32>
    %250 = vector.shape_cast %249 : vector<2xf32> to vector<2x1xf32>
    %251 = vector.extract_strided_slice %161 {offsets = [0, 0], sizes = [2, 128], strides = [1, 1]} : vector<2x520xf32> to vector<2x128xf32>
    %cst_101 = arith.constant 0.000000e+00 : f32
    %252 = vector.broadcast %cst_101 : f32 to vector<2x128xf32>
    %253 = arith.subf %252, %251 : vector<2x128xf32>
    %254 = math.exp %253 : vector<2x128xf32>
    %cst_102 = arith.constant 1.000000e+00 : f32
    %255 = vector.broadcast %cst_102 : f32 to vector<2x128xf32>
    %256 = arith.addf %255, %254 : vector<2x128xf32>
    %cst_103 = arith.constant 1.000000e+00 : f32
    %257 = vector.broadcast %cst_103 : f32 to vector<2x128xf32>
    %258 = arith.divf %257, %256 : vector<2x128xf32>
    %259 = vector.broadcast %217 : vector<2x1xf32> to vector<2x128xf32>
    %260 = arith.mulf %259, %258 : vector<2x128xf32>
    %261 = vector.extract_strided_slice %161 {offsets = [0, 128], sizes = [2, 128], strides = [1, 1]} : vector<2x520xf32> to vector<2x128xf32>
    %cst_104 = arith.constant 0.000000e+00 : f32
    %262 = vector.broadcast %cst_104 : f32 to vector<2x128xf32>
    %263 = arith.subf %262, %261 : vector<2x128xf32>
    %264 = math.exp %263 : vector<2x128xf32>
    %cst_105 = arith.constant 1.000000e+00 : f32
    %265 = vector.broadcast %cst_105 : f32 to vector<2x128xf32>
    %266 = arith.addf %265, %264 : vector<2x128xf32>
    %cst_106 = arith.constant 1.000000e+00 : f32
    %267 = vector.broadcast %cst_106 : f32 to vector<2x128xf32>
    %268 = arith.divf %267, %266 : vector<2x128xf32>
    %269 = vector.broadcast %228 : vector<2x1xf32> to vector<2x128xf32>
    %270 = arith.mulf %269, %268 : vector<2x128xf32>
    %271 = arith.addf %260, %270 : vector<2x128xf32>
    %272 = vector.extract_strided_slice %161 {offsets = [0, 256], sizes = [2, 128], strides = [1, 1]} : vector<2x520xf32> to vector<2x128xf32>
    %cst_107 = arith.constant 0.000000e+00 : f32
    %273 = vector.broadcast %cst_107 : f32 to vector<2x128xf32>
    %274 = arith.subf %273, %272 : vector<2x128xf32>
    %275 = math.exp %274 : vector<2x128xf32>
    %cst_108 = arith.constant 1.000000e+00 : f32
    %276 = vector.broadcast %cst_108 : f32 to vector<2x128xf32>
    %277 = arith.addf %276, %275 : vector<2x128xf32>
    %cst_109 = arith.constant 1.000000e+00 : f32
    %278 = vector.broadcast %cst_109 : f32 to vector<2x128xf32>
    %279 = arith.divf %278, %277 : vector<2x128xf32>
    %280 = vector.broadcast %239 : vector<2x1xf32> to vector<2x128xf32>
    %281 = arith.mulf %280, %279 : vector<2x128xf32>
    %282 = arith.addf %271, %281 : vector<2x128xf32>
    %283 = vector.extract_strided_slice %161 {offsets = [0, 384], sizes = [2, 128], strides = [1, 1]} : vector<2x520xf32> to vector<2x128xf32>
    %cst_110 = arith.constant 0.000000e+00 : f32
    %284 = vector.broadcast %cst_110 : f32 to vector<2x128xf32>
    %285 = arith.subf %284, %283 : vector<2x128xf32>
    %286 = math.exp %285 : vector<2x128xf32>
    %cst_111 = arith.constant 1.000000e+00 : f32
    %287 = vector.broadcast %cst_111 : f32 to vector<2x128xf32>
    %288 = arith.addf %287, %286 : vector<2x128xf32>
    %cst_112 = arith.constant 1.000000e+00 : f32
    %289 = vector.broadcast %cst_112 : f32 to vector<2x128xf32>
    %290 = arith.divf %289, %288 : vector<2x128xf32>
    %291 = vector.broadcast %250 : vector<2x1xf32> to vector<2x128xf32>
    %292 = arith.mulf %291, %290 : vector<2x128xf32>
    %293 = arith.addf %282, %292 : vector<2x128xf32>
    %294 = vector.extract_strided_slice %165 {offsets = [0, 0], sizes = [2, 128], strides = [1, 1]} : vector<2x520xf32> to vector<2x128xf32>
    %cst_113 = arith.constant 0.000000e+00 : f32
    %295 = vector.broadcast %cst_113 : f32 to vector<2x128xf32>
    %296 = arith.subf %295, %294 : vector<2x128xf32>
    %297 = math.exp %296 : vector<2x128xf32>
    %cst_114 = arith.constant 1.000000e+00 : f32
    %298 = vector.broadcast %cst_114 : f32 to vector<2x128xf32>
    %299 = arith.addf %298, %297 : vector<2x128xf32>
    %cst_115 = arith.constant 1.000000e+00 : f32
    %300 = vector.broadcast %cst_115 : f32 to vector<2x128xf32>
    %301 = arith.divf %300, %299 : vector<2x128xf32>
    %302 = vector.broadcast %217 : vector<2x1xf32> to vector<2x128xf32>
    %303 = arith.mulf %302, %301 : vector<2x128xf32>
    %304 = vector.extract_strided_slice %165 {offsets = [0, 128], sizes = [2, 128], strides = [1, 1]} : vector<2x520xf32> to vector<2x128xf32>
    %cst_116 = arith.constant 0.000000e+00 : f32
    %305 = vector.broadcast %cst_116 : f32 to vector<2x128xf32>
    %306 = arith.subf %305, %304 : vector<2x128xf32>
    %307 = math.exp %306 : vector<2x128xf32>
    %cst_117 = arith.constant 1.000000e+00 : f32
    %308 = vector.broadcast %cst_117 : f32 to vector<2x128xf32>
    %309 = arith.addf %308, %307 : vector<2x128xf32>
    %cst_118 = arith.constant 1.000000e+00 : f32
    %310 = vector.broadcast %cst_118 : f32 to vector<2x128xf32>
    %311 = arith.divf %310, %309 : vector<2x128xf32>
    %312 = vector.broadcast %228 : vector<2x1xf32> to vector<2x128xf32>
    %313 = arith.mulf %312, %311 : vector<2x128xf32>
    %314 = arith.addf %303, %313 : vector<2x128xf32>
    %315 = vector.extract_strided_slice %165 {offsets = [0, 256], sizes = [2, 128], strides = [1, 1]} : vector<2x520xf32> to vector<2x128xf32>
    %cst_119 = arith.constant 0.000000e+00 : f32
    %316 = vector.broadcast %cst_119 : f32 to vector<2x128xf32>
    %317 = arith.subf %316, %315 : vector<2x128xf32>
    %318 = math.exp %317 : vector<2x128xf32>
    %cst_120 = arith.constant 1.000000e+00 : f32
    %319 = vector.broadcast %cst_120 : f32 to vector<2x128xf32>
    %320 = arith.addf %319, %318 : vector<2x128xf32>
    %cst_121 = arith.constant 1.000000e+00 : f32
    %321 = vector.broadcast %cst_121 : f32 to vector<2x128xf32>
    %322 = arith.divf %321, %320 : vector<2x128xf32>
    %323 = vector.broadcast %239 : vector<2x1xf32> to vector<2x128xf32>
    %324 = arith.mulf %323, %322 : vector<2x128xf32>
    %325 = arith.addf %314, %324 : vector<2x128xf32>
    %326 = vector.extract_strided_slice %165 {offsets = [0, 384], sizes = [2, 128], strides = [1, 1]} : vector<2x520xf32> to vector<2x128xf32>
    %cst_122 = arith.constant 0.000000e+00 : f32
    %327 = vector.broadcast %cst_122 : f32 to vector<2x128xf32>
    %328 = arith.subf %327, %326 : vector<2x128xf32>
    %329 = math.exp %328 : vector<2x128xf32>
    %cst_123 = arith.constant 1.000000e+00 : f32
    %330 = vector.broadcast %cst_123 : f32 to vector<2x128xf32>
    %331 = arith.addf %330, %329 : vector<2x128xf32>
    %cst_124 = arith.constant 1.000000e+00 : f32
    %332 = vector.broadcast %cst_124 : f32 to vector<2x128xf32>
    %333 = arith.divf %332, %331 : vector<2x128xf32>
    %334 = vector.broadcast %250 : vector<2x1xf32> to vector<2x128xf32>
    %335 = arith.mulf %334, %333 : vector<2x128xf32>
    %336 = arith.addf %325, %335 : vector<2x128xf32>
    %c0_125 = arith.constant 0 : index
    %c0_126 = arith.constant 0 : index
    %c0_127 = arith.constant 0 : index
    %337 = vector.load %arg2[%c0_125, %c0_126, %c0_127] : memref<2x4x256xf32, #tpu.memory_space<vmem>>, vector<2x4x128xf32>
    %338 = vector.shape_cast %293 : vector<2x128xf32> to vector<2x1x128xf32>
    %339 = vector.broadcast %338 : vector<2x1x128xf32> to vector<2x4x128xf32>
    %340 = arith.mulf %337, %339 : vector<2x4x128xf32>
    %c0_128 = arith.constant 0 : index
    %c0_129 = arith.constant 0 : index
    %c0_130 = arith.constant 0 : index
    %341 = vector.load %arg5[%c0_128, %c0_129, %c0_130] : memref<2x4x256xf32, #tpu.memory_space<vmem>>, vector<2x4x128xf32>
    tpu.vector_store %arg5[%c0_128, %c0_129, %c0_130], %340 {strides = array<i32>} : memref<2x4x256xf32, #tpu.memory_space<vmem>>, vector<2x4x128xf32>,
    %c0_131 = arith.constant 0 : index
    %c0_132 = arith.constant 0 : index
    %c128 = arith.constant 128 : index
    %342 = vector.load %arg2[%c0_131, %c0_132, %c128] : memref<2x4x256xf32, #tpu.memory_space<vmem>>, vector<2x4x128xf32>
    %343 = vector.shape_cast %336 : vector<2x128xf32> to vector<2x1x128xf32>
    %344 = vector.broadcast %343 : vector<2x1x128xf32> to vector<2x4x128xf32>
    %345 = arith.mulf %342, %344 : vector<2x4x128xf32>
    %c0_133 = arith.constant 0 : index
    %c0_134 = arith.constant 0 : index
    %c128_135 = arith.constant 128 : index
    %346 = vector.load %arg5[%c0_133, %c0_134, %c128_135] : memref<2x4x256xf32, #tpu.memory_space<vmem>>, vector<2x4x128xf32>
    tpu.vector_store %arg5[%c0_133, %c0_134, %c128_135], %345 {strides = array<i32>} : memref<2x4x256xf32, #tpu.memory_space<vmem>>, vector<2x4x128xf32>,
    return
  }
  func.func @transform_0(%arg0: i32) -> (i32, i32) {
    %c0_i32 = arith.constant 0 : i32
    %c0_i32_0 = arith.constant 0 : i32
    %c0_i32_1 = arith.constant 0 : i32
    return %c0_i32, %c0_i32_0 : i32, i32
  }
  func.func @transform_1(%arg0: i32) -> (i32, i32, i32) {
    %c0_i32 = arith.constant 0 : i32
    %c0_i32_0 = arith.constant 0 : i32
    %c0_i32_1 = arith.constant 0 : i32
    %c0_i32_2 = arith.constant 0 : i32
    return %c0_i32, %c0_i32_0, %c0_i32_1 : i32, i32, i32
  }
  func.func @transform_2(%arg0: i32) -> (i32, i32, i32, i32) {
    %c0_i32 = arith.constant 0 : i32
    %c0_i32_0 = arith.constant 0 : i32
    %c0_i32_1 = arith.constant 0 : i32
    %c0_i32_2 = arith.constant 0 : i32
    %c0_i32_3 = arith.constant 0 : i32
    return %c0_i32, %c0_i32_0, %c0_i32_1, %c0_i32_2 : i32, i32, i32, i32
  }
  func.func @transform_3(%arg0: i32) -> (i32, i32, i32, i32) {
    %c0_i32 = arith.constant 0 : i32
    %c0_i32_0 = arith.constant 0 : i32
    %c0_i32_1 = arith.constant 0 : i32
    %c0_i32_2 = arith.constant 0 : i32
    %c0_i32_3 = arith.constant 0 : i32
    return %c0_i32, %c0_i32_0, %c0_i32_1, %c0_i32_2 : i32, i32, i32, i32
  }
  func.func @transform_4(%arg0: i32) -> (i32, i32, i32) {
    %c0_i32 = arith.constant 0 : i32
    %c0_i32_0 = arith.constant 0 : i32
    %c0_i32_1 = arith.constant 0 : i32
    %c0_i32_2 = arith.constant 0 : i32
    return %c0_i32, %c0_i32_0, %c0_i32_1 : i32, i32, i32
  }
}

</mosaic_0001>

<llo_original>
// kernel: tpu_custom_call.1
$region0: #{tpu_custom_call.1}
  #allocation0 [shape = 'u32[]', space=smem, size = 0x4, offset = 0x4, fixed_abs, tag = 'smem constant byte address 0x4 - core index']
  #allocation1 [shape = 'u32[144,128]{1,0:T(1,128)}', space=vmem, size = 0x12000, scoped, tag = 'internal scratch']
  %s0 = inlined_call_operand.vmem [shape: f32[2,256], index: 0, kind: input, shape index: {}]
  %s1 = inlined_call_operand.vmem [shape: f32[2,4,256], index: 1, kind: input, shape index: {}]
  %s2 = inlined_call_operand.vmem [shape: bf16[2,2,128,520], index: 2, kind: input, shape index: {}]
  %s3 = inlined_call_operand.vmem [shape: f32[2,2,1,520], index: 3, kind: input, shape index: {}]
  %s4 = inlined_call_operand.hbm [shape: f32[2,4,256], index: 4, kind: output, shape index: {}]
  %s5 = sld [smem:[#allocation0]]
  $region26: #{tpu_custom_call.1} parent=0
    _
  %s7 = ssub.s32 1, %s5
  %s8 = scalar_select 0, %s7, %s5
  $region1: #{tpu_custom_call.1} parent=0
    #allocation2 [shape = 'u8[8192]{0}', space=vmem, size = 0x2000, scoped, tag = 'output window, operand 0, single buffered']
    #allocation3 [shape = 's32[1]{0}', space=sflag, size = 0x4, scoped, tag = 'scoped memory for tpu_custom_call.1']
    %9 = vsyncpa [#allocation3], 0
    // Predicated region
    $region2: #{tpu_custom_call.1} parent=1 // pred_check
      _
    $region3: #{tpu_custom_call.1} parent=1 // pred_check_branch
      %11 = sbr.rel (0) target = $region5
    $region4: #{tpu_custom_call.1} parent=1 // pred_region
      _
    $region5: #{tpu_custom_call.1} parent=1 // pred_fallthru
      _
    // Predicated region
    $region6: #{tpu_custom_call.1} parent=1 // pred_check
      _
    $region7: #{tpu_custom_call.1} parent=1 // pred_check_branch
      %13 = sbr.rel (0) target = $region9
    $region8: #{tpu_custom_call.1} parent=1 // pred_region
      _
    $region9: #{tpu_custom_call.1} parent=1 // pred_fallthru
      _
    // Predicated region
    $region10: #{tpu_custom_call.1} parent=1 // pred_check
      _
    $region11: #{tpu_custom_call.1} parent=1 // pred_check_branch
      %15 = sbr.rel (0) target = $region13
    $region12: #{tpu_custom_call.1} parent=1 // pred_region
      _
    $region13: #{tpu_custom_call.1} parent=1 // pred_fallthru
      _
    // Predicated region
    $region14: #{tpu_custom_call.1} parent=1 // pred_check
      _
    $region15: #{tpu_custom_call.1} parent=1 // pred_check_branch
      %17 = sbr.rel (0) target = $region17
    $region16: #{tpu_custom_call.1} parent=1 // pred_region
      _
    $region17: #{tpu_custom_call.1} parent=1 // pred_fallthru
      _
    %v19 = vld [vmem:[%s0] sm:$0xf]
    %v20 = vld [vmem:[%s2] sm:$0xff]
    %v21 = vld [vmem:[%s2 + $0x8] sm:$0xff]
    %v22 = vld [vmem:[%s2 + $0x10] sm:$0xf]
    %v23 = vld [vmem:[%s2 + $0x14] sm:$0xff]
    %v24 = vld [vmem:[%s2 + $0x1c] sm:$0xff]
    %v25 = vld [vmem:[%s2 + $0x24] sm:$0xf]
    %v26 = vld [vmem:[%s2 + $0x28] sm:$0xff]
    %v27 = vld [vmem:[%s2 + $0x30] sm:$0xff]
    %v28 = vld [vmem:[%s2 + $0x38] sm:$0xf]
    %v29 = vld [vmem:[%s2 + $0x3c] sm:$0xff]
    %v30 = vld [vmem:[%s2 + $0x44] sm:$0xff]
    %v31 = vld [vmem:[%s2 + $0x4c] sm:$0xf]
    %v32 = vld [vmem:[%s2 + $0x50] sm:$0xff]
    %v33 = vld [vmem:[%s2 + $0x58] sm:$0xff]
    %v34 = vld [vmem:[%s2 + $0x60] sm:$0xf]
    %v35 = vld [vmem:[%s2 + $0x64] sm:$0xff]
    %v36 = vld [vmem:[%s2 + $0x6c] sm:$0xff]
    %v37 = vld [vmem:[%s2 + $0x74] sm:$0xf]
    %v38 = vld [vmem:[%s2 + $0x78] sm:$0xff]
    %v39 = vld [vmem:[%s2 + $0x80] sm:$0xff]
    %v40 = vld [vmem:[%s2 + $0x88] sm:$0xf]
    %v41 = vld [vmem:[%s2 + $0x8c] sm:$0xff]
    %v42 = vld [vmem:[%s2 + $0x94] sm:$0xff]
    %v43 = vld [vmem:[%s2 + $0x9c] sm:$0xf]
    %v44 = vld [vmem:[%s2 + $0xa0] sm:$0xff]
    %v45 = vld [vmem:[%s2 + $0xa8] sm:$0xff]
    %v46 = vld [vmem:[%s2 + $0xb0] sm:$0xf]
    %v47 = vld [vmem:[%s2 + $0xb4] sm:$0xff]
    %v48 = vld [vmem:[%s2 + $0xbc] sm:$0xff]
    %v49 = vld [vmem:[%s2 + $0xc4] sm:$0xf]
    %v50 = vld [vmem:[%s2 + $0xc8] sm:$0xff]
    %v51 = vld [vmem:[%s2 + $0xd0] sm:$0xff]
    %v52 = vld [vmem:[%s2 + $0xd8] sm:$0xf]
    %v53 = vld [vmem:[%s2 + $0xdc] sm:$0xff]
    %v54 = vld [vmem:[%s2 + $0xe4] sm:$0xff]
    %v55 = vld [vmem:[%s2 + $0xec] sm:$0xf]
    %v56 = vld [vmem:[%s2 + $0xf0] sm:$0xff]
    %v57 = vld [vmem:[%s2 + $0xf8] sm:$0xff]
    %v58 = vld [vmem:[%s2 + $0x100] sm:$0xf]
    %v59 = vld [vmem:[%s2 + $0x104] sm:$0xff]
    %v60 = vld [vmem:[%s2 + $0x10c] sm:$0xff]
    %v61 = vld [vmem:[%s2 + $0x114] sm:$0xf]
    %v62 = vld [vmem:[%s2 + $0x118] sm:$0xff]
    %v63 = vld [vmem:[%s2 + $0x120] sm:$0xff]
    %v64 = vld [vmem:[%s2 + $0x128] sm:$0xf]
    %v65 = vld [vmem:[%s2 + $0x12c] sm:$0xff]
    %v66 = vld [vmem:[%s2 + $0x134] sm:$0xff]
    %v67 = vld [vmem:[%s2 + $0x13c] sm:$0xf]
    %s68 = scalar_lea.vmem %s2, 320
    %v69 = vld [vmem:[%s68] sm:$0xff]
    %v70 = vld [vmem:[%s68 + $0x8] sm:$0xff]
    %v71 = vld [vmem:[%s68 + $0x10] sm:$0xf]
    %v72 = vld [vmem:[%s68 + $0x14] sm:$0xff]
    %v73 = vld [vmem:[%s68 + $0x1c] sm:$0xff]
    %v74 = vld [vmem:[%s68 + $0x24] sm:$0xf]
    %v75 = vld [vmem:[%s68 + $0x28] sm:$0xff]
    %v76 = vld [vmem:[%s68 + $0x30] sm:$0xff]
    %v77 = vld [vmem:[%s68 + $0x38] sm:$0xf]
    %v78 = vld [vmem:[%s68 + $0x3c] sm:$0xff]
    %v79 = vld [vmem:[%s68 + $0x44] sm:$0xff]
    %v80 = vld [vmem:[%s68 + $0x4c] sm:$0xf]
    %v81 = vld [vmem:[%s68 + $0x50] sm:$0xff]
    %v82 = vld [vmem:[%s68 + $0x58] sm:$0xff]
    %v83 = vld [vmem:[%s68 + $0x60] sm:$0xf]
    %v84 = vld [vmem:[%s68 + $0x64] sm:$0xff]
    %v85 = vld [vmem:[%s68 + $0x6c] sm:$0xff]
    %v86 = vld [vmem:[%s68 + $0x74] sm:$0xf]
    %v87 = vld [vmem:[%s68 + $0x78] sm:$0xff]
    %v88 = vld [vmem:[%s68 + $0x80] sm:$0xff]
    %v89 = vld [vmem:[%s68 + $0x88] sm:$0xf]
    %v90 = vld [vmem:[%s68 + $0x8c] sm:$0xff]
    %v91 = vld [vmem:[%s68 + $0x94] sm:$0xff]
    %v92 = vld [vmem:[%s68 + $0x9c] sm:$0xf]
    %v93 = vld [vmem:[%s68 + $0xa0] sm:$0xff]
    %v94 = vld [vmem:[%s68 + $0xa8] sm:$0xff]
    %v95 = vld [vmem:[%s68 + $0xb0] sm:$0xf]
    %v96 = vld [vmem:[%s68 + $0xb4] sm:$0xff]
    %v97 = vld [vmem:[%s68 + $0xbc] sm:$0xff]
    %v98 = vld [vmem:[%s68 + $0xc4] sm:$0xf]
    %v99 = vld [vmem:[%s68 + $0xc8] sm:$0xff]
    %v100 = vld [vmem:[%s68 + $0xd0] sm:$0xff]
    %v101 = vld [vmem:[%s68 + $0xd8] sm:$0xf]
    %v102 = vld [vmem:[%s68 + $0xdc] sm:$0xff]
    %v103 = vld [vmem:[%s68 + $0xe4] sm:$0xff]
    %v104 = vld [vmem:[%s68 + $0xec] sm:$0xf]
    %v105 = vld [vmem:[%s68 + $0xf0] sm:$0xff]
    %v106 = vld [vmem:[%s68 + $0xf8] sm:$0xff]
    %v107 = vld [vmem:[%s68 + $0x100] sm:$0xf]
    %v108 = vld [vmem:[%s68 + $0x104] sm:$0xff]
    %v109 = vld [vmem:[%s68 + $0x10c] sm:$0xff]
    %v110 = vld [vmem:[%s68 + $0x114] sm:$0xf]
    %v111 = vld [vmem:[%s68 + $0x118] sm:$0xff]
    %v112 = vld [vmem:[%s68 + $0x120] sm:$0xff]
    %v113 = vld [vmem:[%s68 + $0x128] sm:$0xf]
    %v114 = vld [vmem:[%s68 + $0x12c] sm:$0xff]
    %v115 = vld [vmem:[%s68 + $0x134] sm:$0xff]
    %v116 = vld [vmem:[%s68 + $0x13c] sm:$0xf]
    %v117 = vld [vmem:[%s3] sm:$0x1f]
    %s118 = scalar_lea.vmem %s3, 5
    %v119 = vld [vmem:[%s118] sm:$0x1f]
    %v120 = vpack.c.bf16 %v19, %v19
    %v122 = vlaneseq
    %v123 = vshrl.u32 %v122, 7
    %v124 = vsub.s32 0, %v123
    %v125 = vrot.slane %v117, %v124
    %v126 = vlaneseq
    %v127 = vshrl.u32 %v126, 7
    %v128 = vsub.s32 1, %v127
    %v129 = vrot.slane %v117, %v128
    %v130 = vlaneseq
    %v131 = vshrl.u32 %v130, 7
    %v132 = vsub.s32 2, %v131
    %v133 = vrot.slane %v117, %v132
    %v134 = vlaneseq
    %v135 = vshrl.u32 %v134, 7
    %v136 = vsub.s32 3, %v135
    %v137 = vrot.slane %v117, %v136
    %v138 = vlaneseq
    %v139 = vshrl.u32 %v138, 7
    %v140 = vsub.s32 4, %v139
    %v141 = vrot.slane %v117, %v140
    %v195 = vunpack.c.l.b16 %v20
    %v196 = vunpack.c.h.b16 %v20
    %v197 = vunpack.c.l.b16 %v21
    %v198 = vunpack.c.h.b16 %v21
    %v199 = vunpack.c.l.b16 %v22
    %v200 = vunpack.c.l.b16 %v23
    %v201 = vunpack.c.h.b16 %v23
    %v202 = vunpack.c.l.b16 %v24
    %v203 = vunpack.c.h.b16 %v24
    %v204 = vunpack.c.l.b16 %v25
    %v205 = vunpack.c.l.b16 %v26
    %v206 = vunpack.c.h.b16 %v26
    %v207 = vunpack.c.l.b16 %v27
    %v208 = vunpack.c.h.b16 %v27
    %v209 = vunpack.c.l.b16 %v28
    %v210 = vunpack.c.l.b16 %v29
    %v211 = vunpack.c.h.b16 %v29
    %v212 = vunpack.c.l.b16 %v30
    %v213 = vunpack.c.h.b16 %v30
    %v214 = vunpack.c.l.b16 %v31
    %v215 = vunpack.c.l.b16 %v32
    %v216 = vunpack.c.h.b16 %v32
    %v217 = vunpack.c.l.b16 %v33
    %v218 = vunpack.c.h.b16 %v33
    %v219 = vunpack.c.l.b16 %v34
    %v220 = vunpack.c.l.b16 %v35
    %v221 = vunpack.c.h.b16 %v35
    %v222 = vunpack.c.l.b16 %v36
    %v223 = vunpack.c.h.b16 %v36
    %v224 = vunpack.c.l.b16 %v37
    %v225 = vunpack.c.l.b16 %v38
    %v226 = vunpack.c.h.b16 %v38
    %v227 = vunpack.c.l.b16 %v39
    %v228 = vunpack.c.h.b16 %v39
    %v229 = vunpack.c.l.b16 %v40
    %v230 = vunpack.c.l.b16 %v41
    %v231 = vunpack.c.h.b16 %v41
    %v232 = vunpack.c.l.b16 %v42
    %v233 = vunpack.c.h.b16 %v42
    %v234 = vunpack.c.l.b16 %v43
    %v235 = vunpack.c.l.b16 %v44
    %v236 = vunpack.c.h.b16 %v44
    %v237 = vunpack.c.l.b16 %v45
    %v238 = vunpack.c.h.b16 %v45
    %v239 = vunpack.c.l.b16 %v46
    %v240 = vunpack.c.l.b16 %v47
    %v241 = vunpack.c.h.b16 %v47
    %v242 = vunpack.c.l.b16 %v48
    %v243 = vunpack.c.h.b16 %v48
    %v244 = vunpack.c.l.b16 %v49
    %v245 = vunpack.c.l.b16 %v50
    %v246 = vunpack.c.h.b16 %v50
    %v247 = vunpack.c.l.b16 %v51
    %v248 = vunpack.c.h.b16 %v51
    %v249 = vunpack.c.l.b16 %v52
    %v250 = vunpack.c.l.b16 %v53
    %v251 = vunpack.c.h.b16 %v53
    %v252 = vunpack.c.l.b16 %v54
    %v253 = vunpack.c.h.b16 %v54
    %v254 = vunpack.c.l.b16 %v55
    %v255 = vunpack.c.l.b16 %v56
    %v256 = vunpack.c.h.b16 %v56
    %v257 = vunpack.c.l.b16 %v57
    %v258 = vunpack.c.h.b16 %v57
    %v259 = vunpack.c.l.b16 %v58
    %v260 = vunpack.c.l.b16 %v59
    %v261 = vunpack.c.h.b16 %v59
    %v262 = vunpack.c.l.b16 %v60
    %v263 = vunpack.c.h.b16 %v60
    %v264 = vunpack.c.l.b16 %v61
    %v265 = vunpack.c.l.b16 %v62
    %v266 = vunpack.c.h.b16 %v62
    %v267 = vunpack.c.l.b16 %v63
    %v268 = vunpack.c.h.b16 %v63
    %v269 = vunpack.c.l.b16 %v64
    %v270 = vunpack.c.l.b16 %v65
    %v271 = vunpack.c.h.b16 %v65
    %v272 = vunpack.c.l.b16 %v66
    %v273 = vunpack.c.h.b16 %v66
    %v274 = vunpack.c.l.b16 %v67
    %v275 = vpack.c.b16 %v200, %v195
    %v276 = vpack.c.b16 %v201, %v196
    %v277 = vpack.c.b16 %v202, %v197
    %v278 = vpack.c.b16 %v203, %v198
    %v279 = vpack.c.b16 %v204, %v199
    %v280 = vpack.c.b16 %v210, %v205
    %v281 = vpack.c.b16 %v211, %v206
    %v282 = vpack.c.b16 %v212, %v207
    %v283 = vpack.c.b16 %v213, %v208
    %v284 = vpack.c.b16 %v214, %v209
    %v285 = vpack.c.b16 %v220, %v215
    %v286 = vpack.c.b16 %v221, %v216
    %v287 = vpack.c.b16 %v222, %v217
    %v288 = vpack.c.b16 %v223, %v218
    %v289 = vpack.c.b16 %v224, %v219
    %v290 = vpack.c.b16 %v230, %v225
    %v291 = vpack.c.b16 %v231, %v226
    %v292 = vpack.c.b16 %v232, %v227
    %v293 = vpack.c.b16 %v233, %v228
    %v294 = vpack.c.b16 %v234, %v229
    %v295 = vpack.c.b16 %v240, %v235
    %v296 = vpack.c.b16 %v241, %v236
    %v297 = vpack.c.b16 %v242, %v237
    %v298 = vpack.c.b16 %v243, %v238
    %v299 = vpack.c.b16 %v244, %v239
    %v300 = vpack.c.b16 %v250, %v245
    %v301 = vpack.c.b16 %v251, %v246
    %v302 = vpack.c.b16 %v252, %v247
    %v303 = vpack.c.b16 %v253, %v248
    %v304 = vpack.c.b16 %v254, %v249
    %v305 = vpack.c.b16 %v260, %v255
    %v306 = vpack.c.b16 %v261, %v256
    %v307 = vpack.c.b16 %v262, %v257
    %v308 = vpack.c.b16 %v263, %v258
    %v309 = vpack.c.b16 %v264, %v259
    %v310 = vpack.c.b16 %v270, %v265
    %v311 = vpack.c.b16 %v271, %v266
    %v312 = vpack.c.b16 %v272, %v267
    %v313 = vpack.c.b16 %v273, %v268
    %v314 = vpack.c.b16 %v274, %v269
    %355 = vmatprep.subr.bf16.mxu0 %v276
    %356 = vmatpush1.bf16.msra.mxu0 %v275
    %357 = vmatprep.subr.bf16.mxu0 %v281
    %358 = vmatpush1.bf16.msra.mxu0 %v280
    %359 = vmatprep.subr.bf16.mxu0 %v286
    %360 = vmatpush1.bf16.msra.mxu0 %v285
    %361 = vmatprep.subr.bf16.mxu0 %v291
    %362 = vmatpush1.bf16.msra.mxu0 %v290
    %363 = vmatprep.subr.bf16.mxu0 %v296
    %364 = vmatpush1.bf16.msra.mxu0 %v295
    %365 = vmatprep.subr.bf16.mxu0 %v301
    %366 = vmatpush1.bf16.msra.mxu0 %v300
    %367 = vmatprep.subr.bf16.mxu0 %v306
    %368 = vmatpush1.bf16.msra.mxu0 %v305
    %369 = vmatprep.subr.bf16.mxu0 %v311
    %370 = vmatpush1.bf16.msra.mxu0 %v310
    %371 = vmatprep.subr.bf16.mxu0 0
    %372 = vmatpush1.bf16.msra.mxu0 0
    %373 = vmatprep.subr.bf16.mxu0 0
    %374 = vmatpush1.bf16.msra.mxu0 0
    %375 = vmatprep.subr.bf16.mxu0 0
    %376 = vmatpush1.bf16.msra.mxu0 0
    %377 = vmatprep.subr.bf16.mxu0 0
    %378 = vmatpush1.bf16.msra.mxu0 0
    %379 = vmatprep.subr.bf16.mxu0 0
    %380 = vmatpush1.bf16.msra.mxu0 0
    %381 = vmatprep.subr.bf16.mxu0 0
    %382 = vmatpush1.bf16.msra.mxu0 0
    %383 = vmatprep.subr.bf16.mxu0 0
    %384 = vmatpush1.bf16.msra.mxu0 0
    %385 = vmatprep.subr.bf16.mxu0 0
    %386 = vmatpush1.bf16.msra.mxu0 0
    %387 = vmatprep.mubr.bf16.mxu0 0
    %388 = vmatmul.mubr.bf16.gmra.mrb[0].mxu0 %v120
    %v389 = vpop.f32.mrb[0].mxu0
    %v390 = vadd.f32 %v125, %v389
    %v391 = vpop.f32.mrb[0].mxu0
    %v392 = vadd.f32 %v129, %v391
    %v393 = vpop.f32.mrb[0].mxu0
    %v394 = vpop.f32.mrb[0].mxu0
    %395 = vdwg.mxu0
    %396 = vmatprep.subr.bf16.mxu0 %v278
    %397 = vmatpush1.bf16.msra.mxu0 %v277
    %398 = vmatprep.subr.bf16.mxu0 %v283
    %399 = vmatpush1.bf16.msra.mxu0 %v282
    %400 = vmatprep.subr.bf16.mxu0 %v288
    %401 = vmatpush1.bf16.msra.mxu0 %v287
    %402 = vmatprep.subr.bf16.mxu0 %v293
    %403 = vmatpush1.bf16.msra.mxu0 %v292
    %404 = vmatprep.subr.bf16.mxu0 %v298
    %405 = vmatpush1.bf16.msra.mxu0 %v297
    %406 = vmatprep.subr.bf16.mxu0 %v303
    %407 = vmatpush1.bf16.msra.mxu0 %v302
    %408 = vmatprep.subr.bf16.mxu0 %v308
    %409 = vmatpush1.bf16.msra.mxu0 %v307
    %410 = vmatprep.subr.bf16.mxu0 %v313
    %411 = vmatpush1.bf16.msra.mxu0 %v312
    %412 = vmatprep.subr.bf16.mxu0 0
    %413 = vmatpush1.bf16.msra.mxu0 0
    %414 = vmatprep.subr.bf16.mxu0 0
    %415 = vmatpush1.bf16.msra.mxu0 0
    %416 = vmatprep.subr.bf16.mxu0 0
    %417 = vmatpush1.bf16.msra.mxu0 0
    %418 = vmatprep.subr.bf16.mxu0 0
    %419 = vmatpush1.bf16.msra.mxu0 0
    %420 = vmatprep.subr.bf16.mxu0 0
    %421 = vmatpush1.bf16.msra.mxu0 0
    %422 = vmatprep.subr.bf16.mxu0 0
    %423 = vmatpush1.bf16.msra.mxu0 0
    %424 = vmatprep.subr.bf16.mxu0 0
    %425 = vmatpush1.bf16.msra.mxu0 0
    %426 = vmatprep.subr.bf16.mxu0 0
    %427 = vmatpush1.bf16.msra.mxu0 0
    %428 = vmatprep.mubr.bf16.mxu0 0
    %429 = vmatmul.mubr.bf16.gmra.mrb[0].mxu0 %v120
    %v430 = vpop.f32.mrb[0].mxu0
    %v431 = vadd.f32 %v133, %v430
    %v432 = vpop.f32.mrb[0].mxu0
    %v433 = vadd.f32 %v137, %v432
    %v434 = vpop.f32.mrb[0].mxu0
    %v435 = vpop.f32.mrb[0].mxu0
    %436 = vdwg.mxu0
    %437 = vmatprep.subr.bf16.mxu0 0
    %438 = vmatpush1.bf16.msra.mxu0 %v279
    %439 = vmatprep.subr.bf16.mxu0 0
    %440 = vmatpush1.bf16.msra.mxu0 %v284
    %441 = vmatprep.subr.bf16.mxu0 0
    %442 = vmatpush1.bf16.msra.mxu0 %v289
    %443 = vmatprep.subr.bf16.mxu0 0
    %444 = vmatpush1.bf16.msra.mxu0 %v294
    %445 = vmatprep.subr.bf16.mxu0 0
    %446 = vmatpush1.bf16.msra.mxu0 %v299
    %447 = vmatprep.subr.bf16.mxu0 0
    %448 = vmatpush1.bf16.msra.mxu0 %v304
    %449 = vmatprep.subr.bf16.mxu0 0
    %450 = vmatpush1.bf16.msra.mxu0 %v309
    %451 = vmatprep.subr.bf16.mxu0 0
    %452 = vmatpush1.bf16.msra.mxu0 %v314
    %453 = vmatprep.subr.bf16.mxu0 0
    %454 = vmatpush1.bf16.msra.mxu0 0
    %455 = vmatprep.subr.bf16.mxu0 0
    %456 = vmatpush1.bf16.msra.mxu0 0
    %457 = vmatprep.subr.bf16.mxu0 0
    %458 = vmatpush1.bf16.msra.mxu0 0
    %459 = vmatprep.subr.bf16.mxu0 0
    %460 = vmatpush1.bf16.msra.mxu0 0
    %461 = vmatprep.subr.bf16.mxu0 0
    %462 = vmatpush1.bf16.msra.mxu0 0
    %463 = vmatprep.subr.bf16.mxu0 0
    %464 = vmatpush1.bf16.msra.mxu0 0
    %465 = vmatprep.subr.bf16.mxu0 0
    %466 = vmatpush1.bf16.msra.mxu0 0
    %467 = vmatprep.subr.bf16.mxu0 0
    %468 = vmatpush1.bf16.msra.mxu0 0
    %469 = vmatprep.mubr.bf16.mxu0 0
    %470 = vmatmul.mubr.bf16.gmra.mrb[0].mxu0 %v120
    %v471 = vpop.f32.mrb[0].mxu0
    %v472 = vadd.f32 %v141, %v471
    %v473 = vpop.f32.mrb[0].mxu0
    %v474 = vpop.f32.mrb[0].mxu0
    %v475 = vpop.f32.mrb[0].mxu0
    %476 = vdwg.mxu0
    %v479 = vunpack.c.l.s4 1983009808
    %v480 = vunpack.c.0.s8 %v479
    %v481 = vlaneseq
    %v482 = vshrl.u32 %v481, 7
    %v483 = vsub.s32 %v480, %v482
    %v484 = vrot.slane %v19, %v483
    %v485 = vcombine.high %v484, %v484
    %v487 = vpack.c.bf16 %v485, %v485
    %v489 = vlaneseq
    %v490 = vshrl.u32 %v489, 7
    %v491 = vsub.s32 0, %v490
    %v492 = vrot.slane %v119, %v491
    %v493 = vlaneseq
    %v494 = vshrl.u32 %v493, 7
    %v495 = vsub.s32 1, %v494
    %v496 = vrot.slane %v119, %v495
    %v497 = vlaneseq
    %v498 = vshrl.u32 %v497, 7
    %v499 = vsub.s32 2, %v498
    %v500 = vrot.slane %v119, %v499
    %v501 = vlaneseq
    %v502 = vshrl.u32 %v501, 7
    %v503 = vsub.s32 3, %v502
    %v504 = vrot.slane %v119, %v503
    %v505 = vlaneseq
    %v506 = vshrl.u32 %v505, 7
    %v507 = vsub.s32 4, %v506
    %v508 = vrot.slane %v119, %v507
    %v562 = vunpack.c.l.b16 %v69
    %v563 = vunpack.c.h.b16 %v69
    %v564 = vunpack.c.l.b16 %v70
    %v565 = vunpack.c.h.b16 %v70
    %v566 = vunpack.c.l.b16 %v71
    %v567 = vunpack.c.l.b16 %v72
    %v568 = vunpack.c.h.b16 %v72
    %v569 = vunpack.c.l.b16 %v73
    %v570 = vunpack.c.h.b16 %v73
    %v571 = vunpack.c.l.b16 %v74
    %v572 = vunpack.c.l.b16 %v75
    %v573 = vunpack.c.h.b16 %v75
    %v574 = vunpack.c.l.b16 %v76
    %v575 = vunpack.c.h.b16 %v76
    %v576 = vunpack.c.l.b16 %v77
    %v577 = vunpack.c.l.b16 %v78
    %v578 = vunpack.c.h.b16 %v78
    %v579 = vunpack.c.l.b16 %v79
    %v580 = vunpack.c.h.b16 %v79
    %v581 = vunpack.c.l.b16 %v80
    %v582 = vunpack.c.l.b16 %v81
    %v583 = vunpack.c.h.b16 %v81
    %v584 = vunpack.c.l.b16 %v82
    %v585 = vunpack.c.h.b16 %v82
    %v586 = vunpack.c.l.b16 %v83
    %v587 = vunpack.c.l.b16 %v84
    %v588 = vunpack.c.h.b16 %v84
    %v589 = vunpack.c.l.b16 %v85
    %v590 = vunpack.c.h.b16 %v85
    %v591 = vunpack.c.l.b16 %v86
    %v592 = vunpack.c.l.b16 %v87
    %v593 = vunpack.c.h.b16 %v87
    %v594 = vunpack.c.l.b16 %v88
    %v595 = vunpack.c.h.b16 %v88
    %v596 = vunpack.c.l.b16 %v89
    %v597 = vunpack.c.l.b16 %v90
    %v598 = vunpack.c.h.b16 %v90
    %v599 = vunpack.c.l.b16 %v91
    %v600 = vunpack.c.h.b16 %v91
    %v601 = vunpack.c.l.b16 %v92
    %v602 = vunpack.c.l.b16 %v93
    %v603 = vunpack.c.h.b16 %v93
    %v604 = vunpack.c.l.b16 %v94
    %v605 = vunpack.c.h.b16 %v94
    %v606 = vunpack.c.l.b16 %v95
    %v607 = vunpack.c.l.b16 %v96
    %v608 = vunpack.c.h.b16 %v96
    %v609 = vunpack.c.l.b16 %v97
    %v610 = vunpack.c.h.b16 %v97
    %v611 = vunpack.c.l.b16 %v98
    %v612 = vunpack.c.l.b16 %v99
    %v613 = vunpack.c.h.b16 %v99
    %v614 = vunpack.c.l.b16 %v100
    %v615 = vunpack.c.h.b16 %v100
    %v616 = vunpack.c.l.b16 %v101
    %v617 = vunpack.c.l.b16 %v102
    %v618 = vunpack.c.h.b16 %v102
    %v619 = vunpack.c.l.b16 %v103
    %v620 = vunpack.c.h.b16 %v103
    %v621 = vunpack.c.l.b16 %v104
    %v622 = vunpack.c.l.b16 %v105
    %v623 = vunpack.c.h.b16 %v105
    %v624 = vunpack.c.l.b16 %v106
    %v625 = vunpack.c.h.b16 %v106
    %v626 = vunpack.c.l.b16 %v107
    %v627 = vunpack.c.l.b16 %v108
    %v628 = vunpack.c.h.b16 %v108
    %v629 = vunpack.c.l.b16 %v109
    %v630 = vunpack.c.h.b16 %v109
    %v631 = vunpack.c.l.b16 %v110
    %v632 = vunpack.c.l.b16 %v111
    %v633 = vunpack.c.h.b16 %v111
    %v634 = vunpack.c.l.b16 %v112
    %v635 = vunpack.c.h.b16 %v112
    %v636 = vunpack.c.l.b16 %v113
    %v637 = vunpack.c.l.b16 %v114
    %v638 = vunpack.c.h.b16 %v114
    %v639 = vunpack.c.l.b16 %v115
    %v640 = vunpack.c.h.b16 %v115
    %v641 = vunpack.c.l.b16 %v116
    %v642 = vpack.c.b16 %v567, %v562
    %v643 = vpack.c.b16 %v568, %v563
    %v644 = vpack.c.b16 %v569, %v564
    %v645 = vpack.c.b16 %v570, %v565
    %v646 = vpack.c.b16 %v571, %v566
    %v647 = vpack.c.b16 %v577, %v572
    %v648 = vpack.c.b16 %v578, %v573
    %v649 = vpack.c.b16 %v579, %v574
    %v650 = vpack.c.b16 %v580, %v575
    %v651 = vpack.c.b16 %v581, %v576
    %v652 = vpack.c.b16 %v587, %v582
    %v653 = vpack.c.b16 %v588, %v583
    %v654 = vpack.c.b16 %v589, %v584
    %v655 = vpack.c.b16 %v590, %v585
    %v656 = vpack.c.b16 %v591, %v586
    %v657 = vpack.c.b16 %v597, %v592
    %v658 = vpack.c.b16 %v598, %v593
    %v659 = vpack.c.b16 %v599, %v594
    %v660 = vpack.c.b16 %v600, %v595
    %v661 = vpack.c.b16 %v601, %v596
    %v662 = vpack.c.b16 %v607, %v602
    %v663 = vpack.c.b16 %v608, %v603
    %v664 = vpack.c.b16 %v609, %v604
    %v665 = vpack.c.b16 %v610, %v605
    %v666 = vpack.c.b16 %v611, %v606
    %v667 = vpack.c.b16 %v617, %v612
    %v668 = vpack.c.b16 %v618, %v613
    %v669 = vpack.c.b16 %v619, %v614
    %v670 = vpack.c.b16 %v620, %v615
    %v671 = vpack.c.b16 %v621, %v616
    %v672 = vpack.c.b16 %v627, %v622
    %v673 = vpack.c.b16 %v628, %v623
    %v674 = vpack.c.b16 %v629, %v624
    %v675 = vpack.c.b16 %v630, %v625
    %v676 = vpack.c.b16 %v631, %v626
    %v677 = vpack.c.b16 %v637, %v632
    %v678 = vpack.c.b16 %v638, %v633
    %v679 = vpack.c.b16 %v639, %v634
    %v680 = vpack.c.b16 %v640, %v635
    %v681 = vpack.c.b16 %v641, %v636
    %722 = vmatprep.subr.bf16.mxu0 %v643
    %723 = vmatpush1.bf16.msra.mxu0 %v642
    %724 = vmatprep.subr.bf16.mxu0 %v648
    %725 = vmatpush1.bf16.msra.mxu0 %v647
    %726 = vmatprep.subr.bf16.mxu0 %v653
    %727 = vmatpush1.bf16.msra.mxu0 %v652
    %728 = vmatprep.subr.bf16.mxu0 %v658
    %729 = vmatpush1.bf16.msra.mxu0 %v657
    %730 = vmatprep.subr.bf16.mxu0 %v663
    %731 = vmatpush1.bf16.msra.mxu0 %v662
    %732 = vmatprep.subr.bf16.mxu0 %v668
    %733 = vmatpush1.bf16.msra.mxu0 %v667
    %734 = vmatprep.subr.bf16.mxu0 %v673
    %735 = vmatpush1.bf16.msra.mxu0 %v672
    %736 = vmatprep.subr.bf16.mxu0 %v678
    %737 = vmatpush1.bf16.msra.mxu0 %v677
    %738 = vmatprep.subr.bf16.mxu0 0
    %739 = vmatpush1.bf16.msra.mxu0 0
    %740 = vmatprep.subr.bf16.mxu0 0
    %741 = vmatpush1.bf16.msra.mxu0 0
    %742 = vmatprep.subr.bf16.mxu0 0
    %743 = vmatpush1.bf16.msra.mxu0 0
    %744 = vmatprep.subr.bf16.mxu0 0
    %745 = vmatpush1.bf16.msra.mxu0 0
    %746 = vmatprep.subr.bf16.mxu0 0
    %747 = vmatpush1.bf16.msra.mxu0 0
    %748 = vmatprep.subr.bf16.mxu0 0
    %749 = vmatpush1.bf16.msra.mxu0 0
    %750 = vmatprep.subr.bf16.mxu0 0
    %751 = vmatpush1.bf16.msra.mxu0 0
    %752 = vmatprep.subr.bf16.mxu0 0
    %753 = vmatpush1.bf16.msra.mxu0 0
    %754 = vmatprep.mubr.bf16.mxu0 0
    %755 = vmatmul.mubr.bf16.gmra.mrb[0].mxu0 %v487
    %v756 = vpop.f32.mrb[0].mxu0
    %v757 = vadd.f32 %v492, %v756
    %v758 = vpop.f32.mrb[0].mxu0
    %v759 = vadd.f32 %v496, %v758
    %v760 = vpop.f32.mrb[0].mxu0
    %v761 = vpop.f32.mrb[0].mxu0
    %762 = vdwg.mxu0
    %763 = vmatprep.subr.bf16.mxu0 %v645
    %764 = vmatpush1.bf16.msra.mxu0 %v644
    %765 = vmatprep.subr.bf16.mxu0 %v650
    %766 = vmatpush1.bf16.msra.mxu0 %v649
    %767 = vmatprep.subr.bf16.mxu0 %v655
    %768 = vmatpush1.bf16.msra.mxu0 %v654
    %769 = vmatprep.subr.bf16.mxu0 %v660
    %770 = vmatpush1.bf16.msra.mxu0 %v659
    %771 = vmatprep.subr.bf16.mxu0 %v665
    %772 = vmatpush1.bf16.msra.mxu0 %v664
    %773 = vmatprep.subr.bf16.mxu0 %v670
    %774 = vmatpush1.bf16.msra.mxu0 %v669
    %775 = vmatprep.subr.bf16.mxu0 %v675
    %776 = vmatpush1.bf16.msra.mxu0 %v674
    %777 = vmatprep.subr.bf16.mxu0 %v680
    %778 = vmatpush1.bf16.msra.mxu0 %v679
    %779 = vmatprep.subr.bf16.mxu0 0
    %780 = vmatpush1.bf16.msra.mxu0 0
    %781 = vmatprep.subr.bf16.mxu0 0
    %782 = vmatpush1.bf16.msra.mxu0 0
    %783 = vmatprep.subr.bf16.mxu0 0
    %784 = vmatpush1.bf16.msra.mxu0 0
    %785 = vmatprep.subr.bf16.mxu0 0
    %786 = vmatpush1.bf16.msra.mxu0 0
    %787 = vmatprep.subr.bf16.mxu0 0
    %788 = vmatpush1.bf16.msra.mxu0 0
    %789 = vmatprep.subr.bf16.mxu0 0
    %790 = vmatpush1.bf16.msra.mxu0 0
    %791 = vmatprep.subr.bf16.mxu0 0
    %792 = vmatpush1.bf16.msra.mxu0 0
    %793 = vmatprep.subr.bf16.mxu0 0
    %794 = vmatpush1.bf16.msra.mxu0 0
    %795 = vmatprep.mubr.bf16.mxu0 0
    %796 = vmatmul.mubr.bf16.gmra.mrb[0].mxu0 %v487
    %v797 = vpop.f32.mrb[0].mxu0
    %v798 = vadd.f32 %v500, %v797
    %v799 = vpop.f32.mrb[0].mxu0
    %v800 = vadd.f32 %v504, %v799
    %v801 = vpop.f32.mrb[0].mxu0
    %v802 = vpop.f32.mrb[0].mxu0
    %803 = vdwg.mxu0
    %804 = vmatprep.subr.bf16.mxu0 0
    %805 = vmatpush1.bf16.msra.mxu0 %v646
    %806 = vmatprep.subr.bf16.mxu0 0
    %807 = vmatpush1.bf16.msra.mxu0 %v651
    %808 = vmatprep.subr.bf16.mxu0 0
    %809 = vmatpush1.bf16.msra.mxu0 %v656
    %810 = vmatprep.subr.bf16.mxu0 0
    %811 = vmatpush1.bf16.msra.mxu0 %v661
    %812 = vmatprep.subr.bf16.mxu0 0
    %813 = vmatpush1.bf16.msra.mxu0 %v666
    %814 = vmatprep.subr.bf16.mxu0 0
    %815 = vmatpush1.bf16.msra.mxu0 %v671
    %816 = vmatprep.subr.bf16.mxu0 0
    %817 = vmatpush1.bf16.msra.mxu0 %v676
    %818 = vmatprep.subr.bf16.mxu0 0
    %819 = vmatpush1.bf16.msra.mxu0 %v681
    %820 = vmatprep.subr.bf16.mxu0 0
    %821 = vmatpush1.bf16.msra.mxu0 0
    %822 = vmatprep.subr.bf16.mxu0 0
    %823 = vmatpush1.bf16.msra.mxu0 0
    %824 = vmatprep.subr.bf16.mxu0 0
    %825 = vmatpush1.bf16.msra.mxu0 0
    %826 = vmatprep.subr.bf16.mxu0 0
    %827 = vmatpush1.bf16.msra.mxu0 0
    %828 = vmatprep.subr.bf16.mxu0 0
    %829 = vmatpush1.bf16.msra.mxu0 0
    %830 = vmatprep.subr.bf16.mxu0 0
    %831 = vmatpush1.bf16.msra.mxu0 0
    %832 = vmatprep.subr.bf16.mxu0 0
    %833 = vmatpush1.bf16.msra.mxu0 0
    %834 = vmatprep.subr.bf16.mxu0 0
    %835 = vmatpush1.bf16.msra.mxu0 0
    %836 = vmatprep.mubr.bf16.mxu0 0
    %837 = vmatmul.mubr.bf16.gmra.mrb[0].mxu0 %v487
    %v838 = vpop.f32.mrb[0].mxu0
    %v839 = vadd.f32 %v508, %v838
    %v840 = vpop.f32.mrb[0].mxu0
    %v841 = vpop.f32.mrb[0].mxu0
    %v842 = vpop.f32.mrb[0].mxu0
    %843 = vdwg.mxu0
    %v844 = vadd.f32 %v472, %v839
    %vm845 = vcmask 25600
    %v846 = vsel %vm845, %v844, inf
    %847 = vmin.xlane.f32.xlu0 %v846
    %v848 = vpop.xlane.xlu0 %847
    %v849 = vsub.f32 %v844, %v848
    %v850 = vadd.f32 %v849, 1e-15
    %v851 = vsel %vm845, %v850, -inf
    %852 = vmax.xlane.f32.xlu0 %v851
    %v853 = vpop.xlane.xlu0 %852
    %v854 = vrcp.pop %v853
    %v855 = vmul.f32 %v850, %v854
    %v856 = vmul.f32 %v855, 3.0
    %v857 = vfloor.f32 %v856
    %v858 = vceil.f32 %v856
    %v859 = vsub.f32 %v856, %v857
    %v860 = vsub.f32 %v858, %v856
    %v861 = vsel %vm845, %v859, -inf
    %862 = vmax.xlane.f32.xlu0 %v861
    %v863 = vpop.xlane.xlu0 %862
    %v864 = vsel %vm845, %v860, -inf
    %865 = vmax.xlane.f32.xlu0 %v864
    %v866 = vpop.xlane.xlu0 %865
    %v867 = vmax.f32 %v863, %v866
    %v868 = vsub.f32 %v859, %v867
    %v869 = vmul.f32 %v868, 1.442695
    %v870 = vpow.pop %v869
    %v871 = vsub.f32 %v860, %v867
    %v872 = vmul.f32 %v871, 1.442695
    %v873 = vpow.pop %v872
    %v874 = vsel %vm845, %v870, 0.0
    %875 = vadd.xlane.f32.xlu0 %v874
    %v876 = vpop.xlane.xlu0 %875
    %v877 = vsel %vm845, %v873, 0.0
    %878 = vadd.xlane.f32.xlu0 %v877
    %v879 = vpop.xlane.xlu0 %878
    %v880 = vadd.f32 %v876, %v879
    %v881 = vrcp.pop %v880
    %v882 = vmul.f32 1.0, %v881
    %v883 = vmul.f32 %v870, %v882
    %v884 = vmul.f32 %v873, %v882
    %vm885 = vcmp.eq.f32.partialorder %v857, 0.0
    %v886 = vsel %vm885, %v883, 0.0
    %vm887 = vcmp.eq.f32.partialorder %v858, 0.0
    %v888 = vsel %vm887, %v884, 0.0
    %v889 = vadd.f32 %v886, %v888
    %v890 = vsel %vm845, %v889, 0.0
    %891 = vadd.xlane.f32.xlu0 %v890
    %v892 = vpop.xlane.xlu0 %891
    %vm893 = vcmp.eq.f32.partialorder %v857, 1.0
    %v894 = vsel %vm893, %v883, 0.0
    %vm895 = vcmp.eq.f32.partialorder %v858, 1.0
    %v896 = vsel %vm895, %v884, 0.0
    %v897 = vadd.f32 %v894, %v896
    %v898 = vsel %vm845, %v897, 0.0
    %899 = vadd.xlane.f32.xlu0 %v898
    %v900 = vpop.xlane.xlu0 %899
    %vm901 = vcmp.eq.f32.partialorder %v857, 2.0
    %v902 = vsel %vm901, %v883, 0.0
    %vm903 = vcmp.eq.f32.partialorder %v858, 2.0
    %v904 = vsel %vm903, %v884, 0.0
    %v905 = vadd.f32 %v902, %v904
    %v906 = vsel %vm845, %v905, 0.0
    %907 = vadd.xlane.f32.xlu0 %v906
    %v908 = vpop.xlane.xlu0 %907
    %vm909 = vcmp.eq.f32.partialorder %v857, 3.0
    %v910 = vsel %vm909, %v883, 0.0
    %vm911 = vcmp.eq.f32.partialorder %v858, 3.0
    %v912 = vsel %vm911, %v884, 0.0
    %v913 = vadd.f32 %v910, %v912
    %v914 = vsel %vm845, %v913, 0.0
    %915 = vadd.xlane.f32.xlu0 %v914
    %v916 = vpop.xlane.xlu0 %915
    %v917 = vmax.f32 %v390, 0.0
    %v918 = vmul.f32 %v892, %v917
    %v919 = vmax.f32 %v392, 0.0
    %v920 = vmul.f32 %v900, %v919
    %v921 = vadd.f32 %v918, %v920
    %v922 = vmax.f32 %v431, 0.0
    %v923 = vmul.f32 %v908, %v922
    %v924 = vadd.f32 %v921, %v923
    %v925 = vmax.f32 %v433, 0.0
    %v926 = vmul.f32 %v916, %v925
    %v927 = vadd.f32 %v924, %v926
    %v928 = vmax.f32 %v757, 0.0
    %v929 = vmul.f32 %v892, %v928
    %v930 = vmax.f32 %v759, 0.0
    %v931 = vmul.f32 %v900, %v930
    %v932 = vadd.f32 %v929, %v931
    %v933 = vmax.f32 %v798, 0.0
    %v934 = vmul.f32 %v908, %v933
    %v935 = vadd.f32 %v932, %v934
    %v936 = vmax.f32 %v800, 0.0
    %v937 = vmul.f32 %v916, %v936
    %v938 = vadd.f32 %v935, %v937
    %s939 = scalar_lea.vmem %s2, 640
    %v940 = vld [vmem:[%s939] sm:$0xff]
    %v941 = vld [vmem:[%s939 + $0x8] sm:$0xff]
    %v942 = vld [vmem:[%s939 + $0x10] sm:$0xf]
    %v943 = vld [vmem:[%s939 + $0x14] sm:$0xff]
    %v944 = vld [vmem:[%s939 + $0x1c] sm:$0xff]
    %v945 = vld [vmem:[%s939 + $0x24] sm:$0xf]
    %v946 = vld [vmem:[%s939 + $0x28] sm:$0xff]
    %v947 = vld [vmem:[%s939 + $0x30] sm:$0xff]
    %v948 = vld [vmem:[%s939 + $0x38] sm:$0xf]
    %v949 = vld [vmem:[%s939 + $0x3c] sm:$0xff]
    %v950 = vld [vmem:[%s939 + $0x44] sm:$0xff]
    %v951 = vld [vmem:[%s939 + $0x4c] sm:$0xf]
    %v952 = vld [vmem:[%s939 + $0x50] sm:$0xff]
    %v953 = vld [vmem:[%s939 + $0x58] sm:$0xff]
    %v954 = vld [vmem:[%s939 + $0x60] sm:$0xf]
    %v955 = vld [vmem:[%s939 + $0x64] sm:$0xff]
    %v956 = vld [vmem:[%s939 + $0x6c] sm:$0xff]
    %v957 = vld [vmem:[%s939 + $0x74] sm:$0xf]
    %v958 = vld [vmem:[%s939 + $0x78] sm:$0xff]
    %v959 = vld [vmem:[%s939 + $0x80] sm:$0xff]
    %v960 = vld [vmem:[%s939 + $0x88] sm:$0xf]
    %v961 = vld [vmem:[%s939 + $0x8c] sm:$0xff]
    %v962 = vld [vmem:[%s939 + $0x94] sm:$0xff]
    %v963 = vld [vmem:[%s939 + $0x9c] sm:$0xf]
    %v964 = vld [vmem:[%s939 + $0xa0] sm:$0xff]
    %v965 = vld [vmem:[%s939 + $0xa8] sm:$0xff]
    %v966 = vld [vmem:[%s939 + $0xb0] sm:$0xf]
    %v967 = vld [vmem:[%s939 + $0xb4] sm:$0xff]
    %v968 = vld [vmem:[%s939 + $0xbc] sm:$0xff]
    %v969 = vld [vmem:[%s939 + $0xc4] sm:$0xf]
    %v970 = vld [vmem:[%s939 + $0xc8] sm:$0xff]
    %v971 = vld [vmem:[%s939 + $0xd0] sm:$0xff]
    %v972 = vld [vmem:[%s939 + $0xd8] sm:$0xf]
    %v973 = vld [vmem:[%s939 + $0xdc] sm:$0xff]
    %v974 = vld [vmem:[%s939 + $0xe4] sm:$0xff]
    %v975 = vld [vmem:[%s939 + $0xec] sm:$0xf]
    %v976 = vld [vmem:[%s939 + $0xf0] sm:$0xff]
    %v977 = vld [vmem:[%s939 + $0xf8] sm:$0xff]
    %v978 = vld [vmem:[%s939 + $0x100] sm:$0xf]
    %v979 = vld [vmem:[%s939 + $0x104] sm:$0xff]
    %v980 = vld [vmem:[%s939 + $0x10c] sm:$0xff]
    %v981 = vld [vmem:[%s939 + $0x114] sm:$0xf]
    %v982 = vld [vmem:[%s939 + $0x118] sm:$0xff]
    %v983 = vld [vmem:[%s939 + $0x120] sm:$0xff]
    %v984 = vld [vmem:[%s939 + $0x128] sm:$0xf]
    %v985 = vld [vmem:[%s939 + $0x12c] sm:$0xff]
    %v986 = vld [vmem:[%s939 + $0x134] sm:$0xff]
    %v987 = vld [vmem:[%s939 + $0x13c] sm:$0xf]
    %s988 = scalar_lea.vmem %s2, 960
    %v989 = vld [vmem:[%s988] sm:$0xff]
    %v990 = vld [vmem:[%s988 + $0x8] sm:$0xff]
    %v991 = vld [vmem:[%s988 + $0x10] sm:$0xf]
    %v992 = vld [vmem:[%s988 + $0x14] sm:$0xff]
    %v993 = vld [vmem:[%s988 + $0x1c] sm:$0xff]
    %v994 = vld [vmem:[%s988 + $0x24] sm:$0xf]
    %v995 = vld [vmem:[%s988 + $0x28] sm:$0xff]
    %v996 = vld [vmem:[%s988 + $0x30] sm:$0xff]
    %v997 = vld [vmem:[%s988 + $0x38] sm:$0xf]
    %v998 = vld [vmem:[%s988 + $0x3c] sm:$0xff]
    %v999 = vld [vmem:[%s988 + $0x44] sm:$0xff]
    %v1000 = vld [vmem:[%s988 + $0x4c] sm:$0xf]
    %v1001 = vld [vmem:[%s988 + $0x50] sm:$0xff]
    %v1002 = vld [vmem:[%s988 + $0x58] sm:$0xff]
    %v1003 = vld [vmem:[%s988 + $0x60] sm:$0xf]
    %v1004 = vld [vmem:[%s988 + $0x64] sm:$0xff]
    %v1005 = vld [vmem:[%s988 + $0x6c] sm:$0xff]
    %v1006 = vld [vmem:[%s988 + $0x74] sm:$0xf]
    %v1007 = vld [vmem:[%s988 + $0x78] sm:$0xff]
    %v1008 = vld [vmem:[%s988 + $0x80] sm:$0xff]
    %v1009 = vld [vmem:[%s988 + $0x88] sm:$0xf]
    %v1010 = vld [vmem:[%s988 + $0x8c] sm:$0xff]
    %v1011 = vld [vmem:[%s988 + $0x94] sm:$0xff]
    %v1012 = vld [vmem:[%s988 + $0x9c] sm:$0xf]
    %v1013 = vld [vmem:[%s988 + $0xa0] sm:$0xff]
    %v1014 = vld [vmem:[%s988 + $0xa8] sm:$0xff]
    %v1015 = vld [vmem:[%s988 + $0xb0] sm:$0xf]
    %v1016 = vld [vmem:[%s988 + $0xb4] sm:$0xff]
    %v1017 = vld [vmem:[%s988 + $0xbc] sm:$0xff]
    %v1018 = vld [vmem:[%s988 + $0xc4] sm:$0xf]
    %v1019 = vld [vmem:[%s988 + $0xc8] sm:$0xff]
    %v1020 = vld [vmem:[%s988 + $0xd0] sm:$0xff]
    %v1021 = vld [vmem:[%s988 + $0xd8] sm:$0xf]
    %v1022 = vld [vmem:[%s988 + $0xdc] sm:$0xff]
    %v1023 = vld [vmem:[%s988 + $0xe4] sm:$0xff]
    %v1024 = vld [vmem:[%s988 + $0xec] sm:$0xf]
    %v1025 = vld [vmem:[%s988 + $0xf0] sm:$0xff]
    %v1026 = vld [vmem:[%s988 + $0xf8] sm:$0xff]
    %v1027 = vld [vmem:[%s988 + $0x100] sm:$0xf]
    %v1028 = vld [vmem:[%s988 + $0x104] sm:$0xff]
    %v1029 = vld [vmem:[%s988 + $0x10c] sm:$0xff]
    %v1030 = vld [vmem:[%s988 + $0x114] sm:$0xf]
    %v1031 = vld [vmem:[%s988 + $0x118] sm:$0xff]
    %v1032 = vld [vmem:[%s988 + $0x120] sm:$0xff]
    %v1033 = vld [vmem:[%s988 + $0x128] sm:$0xf]
    %v1034 = vld [vmem:[%s988 + $0x12c] sm:$0xff]
    %v1035 = vld [vmem:[%s988 + $0x134] sm:$0xff]
    %v1036 = vld [vmem:[%s988 + $0x13c] sm:$0xf]
    %s1037 = scalar_lea.vmem %s3, 10
    %v1038 = vld [vmem:[%s1037] sm:$0x1f]
    %s1039 = scalar_lea.vmem %s3, 15
    %v1040 = vld [vmem:[%s1039] sm:$0x1f]
    %v1041 = vpack.c.bf16 %v927, %v927
    %v1043 = vlaneseq
    %v1044 = vshrl.u32 %v1043, 7
    %v1045 = vsub.s32 0, %v1044
    %v1046 = vrot.slane %v1038, %v1045
    %v1047 = vlaneseq
    %v1048 = vshrl.u32 %v1047, 7
    %v1049 = vsub.s32 1, %v1048
    %v1050 = vrot.slane %v1038, %v1049
    %v1051 = vlaneseq
    %v1052 = vshrl.u32 %v1051, 7
    %v1053 = vsub.s32 2, %v1052
    %v1054 = vrot.slane %v1038, %v1053
    %v1055 = vlaneseq
    %v1056 = vshrl.u32 %v1055, 7
    %v1057 = vsub.s32 3, %v1056
    %v1058 = vrot.slane %v1038, %v1057
    %v1059 = vlaneseq
    %v1060 = vshrl.u32 %v1059, 7
    %v1061 = vsub.s32 4, %v1060
    %v1062 = vrot.slane %v1038, %v1061
    %v1116 = vunpack.c.l.b16 %v940
    %v1117 = vunpack.c.h.b16 %v940
    %v1118 = vunpack.c.l.b16 %v941
    %v1119 = vunpack.c.h.b16 %v941
    %v1120 = vunpack.c.l.b16 %v942
    %v1121 = vunpack.c.l.b16 %v943
    %v1122 = vunpack.c.h.b16 %v943
    %v1123 = vunpack.c.l.b16 %v944
    %v1124 = vunpack.c.h.b16 %v944
    %v1125 = vunpack.c.l.b16 %v945
    %v1126 = vunpack.c.l.b16 %v946
    %v1127 = vunpack.c.h.b16 %v946
    %v1128 = vunpack.c.l.b16 %v947
    %v1129 = vunpack.c.h.b16 %v947
    %v1130 = vunpack.c.l.b16 %v948
    %v1131 = vunpack.c.l.b16 %v949
    %v1132 = vunpack.c.h.b16 %v949
    %v1133 = vunpack.c.l.b16 %v950
    %v1134 = vunpack.c.h.b16 %v950
    %v1135 = vunpack.c.l.b16 %v951
    %v1136 = vunpack.c.l.b16 %v952
    %v1137 = vunpack.c.h.b16 %v952
    %v1138 = vunpack.c.l.b16 %v953
    %v1139 = vunpack.c.h.b16 %v953
    %v1140 = vunpack.c.l.b16 %v954
    %v1141 = vunpack.c.l.b16 %v955
    %v1142 = vunpack.c.h.b16 %v955
    %v1143 = vunpack.c.l.b16 %v956
    %v1144 = vunpack.c.h.b16 %v956
    %v1145 = vunpack.c.l.b16 %v957
    %v1146 = vunpack.c.l.b16 %v958
    %v1147 = vunpack.c.h.b16 %v958
    %v1148 = vunpack.c.l.b16 %v959
    %v1149 = vunpack.c.h.b16 %v959
    %v1150 = vunpack.c.l.b16 %v960
    %v1151 = vunpack.c.l.b16 %v961
    %v1152 = vunpack.c.h.b16 %v961
    %v1153 = vunpack.c.l.b16 %v962
    %v1154 = vunpack.c.h.b16 %v962
    %v1155 = vunpack.c.l.b16 %v963
    %v1156 = vunpack.c.l.b16 %v964
    %v1157 = vunpack.c.h.b16 %v964
    %v1158 = vunpack.c.l.b16 %v965
    %v1159 = vunpack.c.h.b16 %v965
    %v1160 = vunpack.c.l.b16 %v966
    %v1161 = vunpack.c.l.b16 %v967
    %v1162 = vunpack.c.h.b16 %v967
    %v1163 = vunpack.c.l.b16 %v968
    %v1164 = vunpack.c.h.b16 %v968
    %v1165 = vunpack.c.l.b16 %v969
    %v1166 = vunpack.c.l.b16 %v970
    %v1167 = vunpack.c.h.b16 %v970
    %v1168 = vunpack.c.l.b16 %v971
    %v1169 = vunpack.c.h.b16 %v971
    %v1170 = vunpack.c.l.b16 %v972
    %v1171 = vunpack.c.l.b16 %v973
    %v1172 = vunpack.c.h.b16 %v973
    %v1173 = vunpack.c.l.b16 %v974
    %v1174 = vunpack.c.h.b16 %v974
    %v1175 = vunpack.c.l.b16 %v975
    %v1176 = vunpack.c.l.b16 %v976
    %v1177 = vunpack.c.h.b16 %v976
    %v1178 = vunpack.c.l.b16 %v977
    %v1179 = vunpack.c.h.b16 %v977
    %v1180 = vunpack.c.l.b16 %v978
    %v1181 = vunpack.c.l.b16 %v979
    %v1182 = vunpack.c.h.b16 %v979
    %v1183 = vunpack.c.l.b16 %v980
    %v1184 = vunpack.c.h.b16 %v980
    %v1185 = vunpack.c.l.b16 %v981
    %v1186 = vunpack.c.l.b16 %v982
    %v1187 = vunpack.c.h.b16 %v982
    %v1188 = vunpack.c.l.b16 %v983
    %v1189 = vunpack.c.h.b16 %v983
    %v1190 = vunpack.c.l.b16 %v984
    %v1191 = vunpack.c.l.b16 %v985
    %v1192 = vunpack.c.h.b16 %v985
    %v1193 = vunpack.c.l.b16 %v986
    %v1194 = vunpack.c.h.b16 %v986
    %v1195 = vunpack.c.l.b16 %v987
    %v1196 = vpack.c.b16 %v1121, %v1116
    %v1197 = vpack.c.b16 %v1122, %v1117
    %v1198 = vpack.c.b16 %v1123, %v1118
    %v1199 = vpack.c.b16 %v1124, %v1119
    %v1200 = vpack.c.b16 %v1125, %v1120
    %v1201 = vpack.c.b16 %v1131, %v1126
    %v1202 = vpack.c.b16 %v1132, %v1127
    %v1203 = vpack.c.b16 %v1133, %v1128
    %v1204 = vpack.c.b16 %v1134, %v1129
    %v1205 = vpack.c.b16 %v1135, %v1130
    %v1206 = vpack.c.b16 %v1141, %v1136
    %v1207 = vpack.c.b16 %v1142, %v1137
    %v1208 = vpack.c.b16 %v1143, %v1138
    %v1209 = vpack.c.b16 %v1144, %v1139
    %v1210 = vpack.c.b16 %v1145, %v1140
    %v1211 = vpack.c.b16 %v1151, %v1146
    %v1212 = vpack.c.b16 %v1152, %v1147
    %v1213 = vpack.c.b16 %v1153, %v1148
    %v1214 = vpack.c.b16 %v1154, %v1149
    %v1215 = vpack.c.b16 %v1155, %v1150
    %v1216 = vpack.c.b16 %v1161, %v1156
    %v1217 = vpack.c.b16 %v1162, %v1157
    %v1218 = vpack.c.b16 %v1163, %v1158
    %v1219 = vpack.c.b16 %v1164, %v1159
    %v1220 = vpack.c.b16 %v1165, %v1160
    %v1221 = vpack.c.b16 %v1171, %v1166
    %v1222 = vpack.c.b16 %v1172, %v1167
    %v1223 = vpack.c.b16 %v1173, %v1168
    %v1224 = vpack.c.b16 %v1174, %v1169
    %v1225 = vpack.c.b16 %v1175, %v1170
    %v1226 = vpack.c.b16 %v1181, %v1176
    %v1227 = vpack.c.b16 %v1182, %v1177
    %v1228 = vpack.c.b16 %v1183, %v1178
    %v1229 = vpack.c.b16 %v1184, %v1179
    %v1230 = vpack.c.b16 %v1185, %v1180
    %v1231 = vpack.c.b16 %v1191, %v1186
    %v1232 = vpack.c.b16 %v1192, %v1187
    %v1233 = vpack.c.b16 %v1193, %v1188
    %v1234 = vpack.c.b16 %v1194, %v1189
    %v1235 = vpack.c.b16 %v1195, %v1190
    %1276 = vmatprep.subr.bf16.mxu0 %v1197
    %1277 = vmatpush1.bf16.msra.mxu0 %v1196
    %1278 = vmatprep.subr.bf16.mxu0 %v1202
    %1279 = vmatpush1.bf16.msra.mxu0 %v1201
    %1280 = vmatprep.subr.bf16.mxu0 %v1207
    %1281 = vmatpush1.bf16.msra.mxu0 %v1206
    %1282 = vmatprep.subr.bf16.mxu0 %v1212
    %1283 = vmatpush1.bf16.msra.mxu0 %v1211
    %1284 = vmatprep.subr.bf16.mxu0 %v1217
    %1285 = vmatpush1.bf16.msra.mxu0 %v1216
    %1286 = vmatprep.subr.bf16.mxu0 %v1222
    %1287 = vmatpush1.bf16.msra.mxu0 %v1221
    %1288 = vmatprep.subr.bf16.mxu0 %v1227
    %1289 = vmatpush1.bf16.msra.mxu0 %v1226
    %1290 = vmatprep.subr.bf16.mxu0 %v1232
    %1291 = vmatpush1.bf16.msra.mxu0 %v1231
    %1292 = vmatprep.subr.bf16.mxu0 0
    %1293 = vmatpush1.bf16.msra.mxu0 0
    %1294 = vmatprep.subr.bf16.mxu0 0
    %1295 = vmatpush1.bf16.msra.mxu0 0
    %1296 = vmatprep.subr.bf16.mxu0 0
    %1297 = vmatpush1.bf16.msra.mxu0 0
    %1298 = vmatprep.subr.bf16.mxu0 0
    %1299 = vmatpush1.bf16.msra.mxu0 0
    %1300 = vmatprep.subr.bf16.mxu0 0
    %1301 = vmatpush1.bf16.msra.mxu0 0
    %1302 = vmatprep.subr.bf16.mxu0 0
    %1303 = vmatpush1.bf16.msra.mxu0 0
    %1304 = vmatprep.subr.bf16.mxu0 0
    %1305 = vmatpush1.bf16.msra.mxu0 0
    %1306 = vmatprep.subr.bf16.mxu0 0
    %1307 = vmatpush1.bf16.msra.mxu0 0
    %1308 = vmatprep.mubr.bf16.mxu0 0
    %1309 = vmatmul.mubr.bf16.gmra.mrb[0].mxu0 %v1041
    %v1310 = vpop.f32.mrb[0].mxu0
    %v1311 = vadd.f32 %v1046, %v1310
    %v1312 = vpop.f32.mrb[0].mxu0
    %v1313 = vadd.f32 %v1050, %v1312
    %v1314 = vpop.f32.mrb[0].mxu0
    %v1315 = vpop.f32.mrb[0].mxu0
    %1316 = vdwg.mxu0
    %1317 = vmatprep.subr.bf16.mxu0 %v1199
    %1318 = vmatpush1.bf16.msra.mxu0 %v1198
    %1319 = vmatprep.subr.bf16.mxu0 %v1204
    %1320 = vmatpush1.bf16.msra.mxu0 %v1203
    %1321 = vmatprep.subr.bf16.mxu0 %v1209
    %1322 = vmatpush1.bf16.msra.mxu0 %v1208
    %1323 = vmatprep.subr.bf16.mxu0 %v1214
    %1324 = vmatpush1.bf16.msra.mxu0 %v1213
    %1325 = vmatprep.subr.bf16.mxu0 %v1219
    %1326 = vmatpush1.bf16.msra.mxu0 %v1218
    %1327 = vmatprep.subr.bf16.mxu0 %v1224
    %1328 = vmatpush1.bf16.msra.mxu0 %v1223
    %1329 = vmatprep.subr.bf16.mxu0 %v1229
    %1330 = vmatpush1.bf16.msra.mxu0 %v1228
    %1331 = vmatprep.subr.bf16.mxu0 %v1234
    %1332 = vmatpush1.bf16.msra.mxu0 %v1233
    %1333 = vmatprep.subr.bf16.mxu0 0
    %1334 = vmatpush1.bf16.msra.mxu0 0
    %1335 = vmatprep.subr.bf16.mxu0 0
    %1336 = vmatpush1.bf16.msra.mxu0 0
    %1337 = vmatprep.subr.bf16.mxu0 0
    %1338 = vmatpush1.bf16.msra.mxu0 0
    %1339 = vmatprep.subr.bf16.mxu0 0
    %1340 = vmatpush1.bf16.msra.mxu0 0
    %1341 = vmatprep.subr.bf16.mxu0 0
    %1342 = vmatpush1.bf16.msra.mxu0 0
    %1343 = vmatprep.subr.bf16.mxu0 0
    %1344 = vmatpush1.bf16.msra.mxu0 0
    %1345 = vmatprep.subr.bf16.mxu0 0
    %1346 = vmatpush1.bf16.msra.mxu0 0
    %1347 = vmatprep.subr.bf16.mxu0 0
    %1348 = vmatpush1.bf16.msra.mxu0 0
    %1349 = vmatprep.mubr.bf16.mxu0 0
    %1350 = vmatmul.mubr.bf16.gmra.mrb[0].mxu0 %v1041
    %v1351 = vpop.f32.mrb[0].mxu0
    %v1352 = vadd.f32 %v1054, %v1351
    %v1353 = vpop.f32.mrb[0].mxu0
    %v1354 = vadd.f32 %v1058, %v1353
    %v1355 = vpop.f32.mrb[0].mxu0
    %v1356 = vpop.f32.mrb[0].mxu0
    %1357 = vdwg.mxu0
    %1358 = vmatprep.subr.bf16.mxu0 0
    %1359 = vmatpush1.bf16.msra.mxu0 %v1200
    %1360 = vmatprep.subr.bf16.mxu0 0
    %1361 = vmatpush1.bf16.msra.mxu0 %v1205
    %1362 = vmatprep.subr.bf16.mxu0 0
    %1363 = vmatpush1.bf16.msra.mxu0 %v1210
    %1364 = vmatprep.subr.bf16.mxu0 0
    %1365 = vmatpush1.bf16.msra.mxu0 %v1215
    %1366 = vmatprep.subr.bf16.mxu0 0
    %1367 = vmatpush1.bf16.msra.mxu0 %v1220
    %1368 = vmatprep.subr.bf16.mxu0 0
    %1369 = vmatpush1.bf16.msra.mxu0 %v1225
    %1370 = vmatprep.subr.bf16.mxu0 0
    %1371 = vmatpush1.bf16.msra.mxu0 %v1230
    %1372 = vmatprep.subr.bf16.mxu0 0
    %1373 = vmatpush1.bf16.msra.mxu0 %v1235
    %1374 = vmatprep.subr.bf16.mxu0 0
    %1375 = vmatpush1.bf16.msra.mxu0 0
    %1376 = vmatprep.subr.bf16.mxu0 0
    %1377 = vmatpush1.bf16.msra.mxu0 0
    %1378 = vmatprep.subr.bf16.mxu0 0
    %1379 = vmatpush1.bf16.msra.mxu0 0
    %1380 = vmatprep.subr.bf16.mxu0 0
    %1381 = vmatpush1.bf16.msra.mxu0 0
    %1382 = vmatprep.subr.bf16.mxu0 0
    %1383 = vmatpush1.bf16.msra.mxu0 0
    %1384 = vmatprep.subr.bf16.mxu0 0
    %1385 = vmatpush1.bf16.msra.mxu0 0
    %1386 = vmatprep.subr.bf16.mxu0 0
    %1387 = vmatpush1.bf16.msra.mxu0 0
    %1388 = vmatprep.subr.bf16.mxu0 0
    %1389 = vmatpush1.bf16.msra.mxu0 0
    %1390 = vmatprep.mubr.bf16.mxu0 0
    %1391 = vmatmul.mubr.bf16.gmra.mrb[0].mxu0 %v1041
    %v1392 = vpop.f32.mrb[0].mxu0
    %v1393 = vadd.f32 %v1062, %v1392
    %v1394 = vpop.f32.mrb[0].mxu0
    %v1395 = vpop.f32.mrb[0].mxu0
    %v1396 = vpop.f32.mrb[0].mxu0
    %1397 = vdwg.mxu0
    %v1398 = vpack.c.bf16 %v938, %v938
    %v1400 = vlaneseq
    %v1401 = vshrl.u32 %v1400, 7
    %v1402 = vsub.s32 0, %v1401
    %v1403 = vrot.slane %v1040, %v1402
    %v1404 = vlaneseq
    %v1405 = vshrl.u32 %v1404, 7
    %v1406 = vsub.s32 1, %v1405
    %v1407 = vrot.slane %v1040, %v1406
    %v1408 = vlaneseq
    %v1409 = vshrl.u32 %v1408, 7
    %v1410 = vsub.s32 2, %v1409
    %v1411 = vrot.slane %v1040, %v1410
    %v1412 = vlaneseq
    %v1413 = vshrl.u32 %v1412, 7
    %v1414 = vsub.s32 3, %v1413
    %v1415 = vrot.slane %v1040, %v1414
    %v1416 = vlaneseq
    %v1417 = vshrl.u32 %v1416, 7
    %v1418 = vsub.s32 4, %v1417
    %v1419 = vrot.slane %v1040, %v1418
    %v1473 = vunpack.c.l.b16 %v989
    %v1474 = vunpack.c.h.b16 %v989
    %v1475 = vunpack.c.l.b16 %v990
    %v1476 = vunpack.c.h.b16 %v990
    %v1477 = vunpack.c.l.b16 %v991
    %v1478 = vunpack.c.l.b16 %v992
    %v1479 = vunpack.c.h.b16 %v992
    %v1480 = vunpack.c.l.b16 %v993
    %v1481 = vunpack.c.h.b16 %v993
    %v1482 = vunpack.c.l.b16 %v994
    %v1483 = vunpack.c.l.b16 %v995
    %v1484 = vunpack.c.h.b16 %v995
    %v1485 = vunpack.c.l.b16 %v996
    %v1486 = vunpack.c.h.b16 %v996
    %v1487 = vunpack.c.l.b16 %v997
    %v1488 = vunpack.c.l.b16 %v998
    %v1489 = vunpack.c.h.b16 %v998
    %v1490 = vunpack.c.l.b16 %v999
    %v1491 = vunpack.c.h.b16 %v999
    %v1492 = vunpack.c.l.b16 %v1000
    %v1493 = vunpack.c.l.b16 %v1001
    %v1494 = vunpack.c.h.b16 %v1001
    %v1495 = vunpack.c.l.b16 %v1002
    %v1496 = vunpack.c.h.b16 %v1002
    %v1497 = vunpack.c.l.b16 %v1003
    %v1498 = vunpack.c.l.b16 %v1004
    %v1499 = vunpack.c.h.b16 %v1004
    %v1500 = vunpack.c.l.b16 %v1005
    %v1501 = vunpack.c.h.b16 %v1005
    %v1502 = vunpack.c.l.b16 %v1006
    %v1503 = vunpack.c.l.b16 %v1007
    %v1504 = vunpack.c.h.b16 %v1007
    %v1505 = vunpack.c.l.b16 %v1008
    %v1506 = vunpack.c.h.b16 %v1008
    %v1507 = vunpack.c.l.b16 %v1009
    %v1508 = vunpack.c.l.b16 %v1010
    %v1509 = vunpack.c.h.b16 %v1010
    %v1510 = vunpack.c.l.b16 %v1011
    %v1511 = vunpack.c.h.b16 %v1011
    %v1512 = vunpack.c.l.b16 %v1012
    %v1513 = vunpack.c.l.b16 %v1013
    %v1514 = vunpack.c.h.b16 %v1013
    %v1515 = vunpack.c.l.b16 %v1014
    %v1516 = vunpack.c.h.b16 %v1014
    %v1517 = vunpack.c.l.b16 %v1015
    %v1518 = vunpack.c.l.b16 %v1016
    %v1519 = vunpack.c.h.b16 %v1016
    %v1520 = vunpack.c.l.b16 %v1017
    %v1521 = vunpack.c.h.b16 %v1017
    %v1522 = vunpack.c.l.b16 %v1018
    %v1523 = vunpack.c.l.b16 %v1019
    %v1524 = vunpack.c.h.b16 %v1019
    %v1525 = vunpack.c.l.b16 %v1020
    %v1526 = vunpack.c.h.b16 %v1020
    %v1527 = vunpack.c.l.b16 %v1021
    %v1528 = vunpack.c.l.b16 %v1022
    %v1529 = vunpack.c.h.b16 %v1022
    %v1530 = vunpack.c.l.b16 %v1023
    %v1531 = vunpack.c.h.b16 %v1023
    %v1532 = vunpack.c.l.b16 %v1024
    %v1533 = vunpack.c.l.b16 %v1025
    %v1534 = vunpack.c.h.b16 %v1025
    %v1535 = vunpack.c.l.b16 %v1026
    %v1536 = vunpack.c.h.b16 %v1026
    %v1537 = vunpack.c.l.b16 %v1027
    %v1538 = vunpack.c.l.b16 %v1028
    %v1539 = vunpack.c.h.b16 %v1028
    %v1540 = vunpack.c.l.b16 %v1029
    %v1541 = vunpack.c.h.b16 %v1029
    %v1542 = vunpack.c.l.b16 %v1030
    %v1543 = vunpack.c.l.b16 %v1031
    %v1544 = vunpack.c.h.b16 %v1031
    %v1545 = vunpack.c.l.b16 %v1032
    %v1546 = vunpack.c.h.b16 %v1032
    %v1547 = vunpack.c.l.b16 %v1033
    %v1548 = vunpack.c.l.b16 %v1034
    %v1549 = vunpack.c.h.b16 %v1034
    %v1550 = vunpack.c.l.b16 %v1035
    %v1551 = vunpack.c.h.b16 %v1035
    %v1552 = vunpack.c.l.b16 %v1036
    %v1553 = vpack.c.b16 %v1478, %v1473
    %v1554 = vpack.c.b16 %v1479, %v1474
    %v1555 = vpack.c.b16 %v1480, %v1475
    %v1556 = vpack.c.b16 %v1481, %v1476
    %v1557 = vpack.c.b16 %v1482, %v1477
    %v1558 = vpack.c.b16 %v1488, %v1483
    %v1559 = vpack.c.b16 %v1489, %v1484
    %v1560 = vpack.c.b16 %v1490, %v1485
    %v1561 = vpack.c.b16 %v1491, %v1486
    %v1562 = vpack.c.b16 %v1492, %v1487
    %v1563 = vpack.c.b16 %v1498, %v1493
    %v1564 = vpack.c.b16 %v1499, %v1494
    %v1565 = vpack.c.b16 %v1500, %v1495
    %v1566 = vpack.c.b16 %v1501, %v1496
    %v1567 = vpack.c.b16 %v1502, %v1497
    %v1568 = vpack.c.b16 %v1508, %v1503
    %v1569 = vpack.c.b16 %v1509, %v1504
    %v1570 = vpack.c.b16 %v1510, %v1505
    %v1571 = vpack.c.b16 %v1511, %v1506
    %v1572 = vpack.c.b16 %v1512, %v1507
    %v1573 = vpack.c.b16 %v1518, %v1513
    %v1574 = vpack.c.b16 %v1519, %v1514
    %v1575 = vpack.c.b16 %v1520, %v1515
    %v1576 = vpack.c.b16 %v1521, %v1516
    %v1577 = vpack.c.b16 %v1522, %v1517
    %v1578 = vpack.c.b16 %v1528, %v1523
    %v1579 = vpack.c.b16 %v1529, %v1524
    %v1580 = vpack.c.b16 %v1530, %v1525
    %v1581 = vpack.c.b16 %v1531, %v1526
    %v1582 = vpack.c.b16 %v1532, %v1527
    %v1583 = vpack.c.b16 %v1538, %v1533
    %v1584 = vpack.c.b16 %v1539, %v1534
    %v1585 = vpack.c.b16 %v1540, %v1535
    %v1586 = vpack.c.b16 %v1541, %v1536
    %v1587 = vpack.c.b16 %v1542, %v1537
    %v1588 = vpack.c.b16 %v1548, %v1543
    %v1589 = vpack.c.b16 %v1549, %v1544
    %v1590 = vpack.c.b16 %v1550, %v1545
    %v1591 = vpack.c.b16 %v1551, %v1546
    %v1592 = vpack.c.b16 %v1552, %v1547
    %1633 = vmatprep.subr.bf16.mxu0 %v1554
    %1634 = vmatpush1.bf16.msra.mxu0 %v1553
    %1635 = vmatprep.subr.bf16.mxu0 %v1559
    %1636 = vmatpush1.bf16.msra.mxu0 %v1558
    %1637 = vmatprep.subr.bf16.mxu0 %v1564
    %1638 = vmatpush1.bf16.msra.mxu0 %v1563
    %1639 = vmatprep.subr.bf16.mxu0 %v1569
    %1640 = vmatpush1.bf16.msra.mxu0 %v1568
    %1641 = vmatprep.subr.bf16.mxu0 %v1574
    %1642 = vmatpush1.bf16.msra.mxu0 %v1573
    %1643 = vmatprep.subr.bf16.mxu0 %v1579
    %1644 = vmatpush1.bf16.msra.mxu0 %v1578
    %1645 = vmatprep.subr.bf16.mxu0 %v1584
    %1646 = vmatpush1.bf16.msra.mxu0 %v1583
    %1647 = vmatprep.subr.bf16.mxu0 %v1589
    %1648 = vmatpush1.bf16.msra.mxu0 %v1588
    %1649 = vmatprep.subr.bf16.mxu0 0
    %1650 = vmatpush1.bf16.msra.mxu0 0
    %1651 = vmatprep.subr.bf16.mxu0 0
    %1652 = vmatpush1.bf16.msra.mxu0 0
    %1653 = vmatprep.subr.bf16.mxu0 0
    %1654 = vmatpush1.bf16.msra.mxu0 0
    %1655 = vmatprep.subr.bf16.mxu0 0
    %1656 = vmatpush1.bf16.msra.mxu0 0
    %1657 = vmatprep.subr.bf16.mxu0 0
    %1658 = vmatpush1.bf16.msra.mxu0 0
    %1659 = vmatprep.subr.bf16.mxu0 0
    %1660 = vmatpush1.bf16.msra.mxu0 0
    %1661 = vmatprep.subr.bf16.mxu0 0
    %1662 = vmatpush1.bf16.msra.mxu0 0
    %1663 = vmatprep.subr.bf16.mxu0 0
    %1664 = vmatpush1.bf16.msra.mxu0 0
    %1665 = vmatprep.mubr.bf16.mxu0 0
    %1666 = vmatmul.mubr.bf16.gmra.mrb[0].mxu0 %v1398
    %v1667 = vpop.f32.mrb[0].mxu0
    %v1668 = vadd.f32 %v1403, %v1667
    %v1669 = vpop.f32.mrb[0].mxu0
    %v1670 = vadd.f32 %v1407, %v1669
    %v1671 = vpop.f32.mrb[0].mxu0
    %v1672 = vpop.f32.mrb[0].mxu0
    %1673 = vdwg.mxu0
    %1674 = vmatprep.subr.bf16.mxu0 %v1556
    %1675 = vmatpush1.bf16.msra.mxu0 %v1555
    %1676 = vmatprep.subr.bf16.mxu0 %v1561
    %1677 = vmatpush1.bf16.msra.mxu0 %v1560
    %1678 = vmatprep.subr.bf16.mxu0 %v1566
    %1679 = vmatpush1.bf16.msra.mxu0 %v1565
    %1680 = vmatprep.subr.bf16.mxu0 %v1571
    %1681 = vmatpush1.bf16.msra.mxu0 %v1570
    %1682 = vmatprep.subr.bf16.mxu0 %v1576
    %1683 = vmatpush1.bf16.msra.mxu0 %v1575
    %1684 = vmatprep.subr.bf16.mxu0 %v1581
    %1685 = vmatpush1.bf16.msra.mxu0 %v1580
    %1686 = vmatprep.subr.bf16.mxu0 %v1586
    %1687 = vmatpush1.bf16.msra.mxu0 %v1585
    %1688 = vmatprep.subr.bf16.mxu0 %v1591
    %1689 = vmatpush1.bf16.msra.mxu0 %v1590
    %1690 = vmatprep.subr.bf16.mxu0 0
    %1691 = vmatpush1.bf16.msra.mxu0 0
    %1692 = vmatprep.subr.bf16.mxu0 0
    %1693 = vmatpush1.bf16.msra.mxu0 0
    %1694 = vmatprep.subr.bf16.mxu0 0
    %1695 = vmatpush1.bf16.msra.mxu0 0
    %1696 = vmatprep.subr.bf16.mxu0 0
    %1697 = vmatpush1.bf16.msra.mxu0 0
    %1698 = vmatprep.subr.bf16.mxu0 0
    %1699 = vmatpush1.bf16.msra.mxu0 0
    %1700 = vmatprep.subr.bf16.mxu0 0
    %1701 = vmatpush1.bf16.msra.mxu0 0
    %1702 = vmatprep.subr.bf16.mxu0 0
    %1703 = vmatpush1.bf16.msra.mxu0 0
    %1704 = vmatprep.subr.bf16.mxu0 0
    %1705 = vmatpush1.bf16.msra.mxu0 0
    %1706 = vmatprep.mubr.bf16.mxu0 0
    %1707 = vmatmul.mubr.bf16.gmra.mrb[0].mxu0 %v1398
    %v1708 = vpop.f32.mrb[0].mxu0
    %v1709 = vadd.f32 %v1411, %v1708
    %v1710 = vpop.f32.mrb[0].mxu0
    %v1711 = vadd.f32 %v1415, %v1710
    %v1712 = vpop.f32.mrb[0].mxu0
    %v1713 = vpop.f32.mrb[0].mxu0
    %1714 = vdwg.mxu0
    %1715 = vmatprep.subr.bf16.mxu0 0
    %1716 = vmatpush1.bf16.msra.mxu0 %v1557
    %1717 = vmatprep.subr.bf16.mxu0 0
    %1718 = vmatpush1.bf16.msra.mxu0 %v1562
    %1719 = vmatprep.subr.bf16.mxu0 0
    %1720 = vmatpush1.bf16.msra.mxu0 %v1567
    %1721 = vmatprep.subr.bf16.mxu0 0
    %1722 = vmatpush1.bf16.msra.mxu0 %v1572
    %1723 = vmatprep.subr.bf16.mxu0 0
    %1724 = vmatpush1.bf16.msra.mxu0 %v1577
    %1725 = vmatprep.subr.bf16.mxu0 0
    %1726 = vmatpush1.bf16.msra.mxu0 %v1582
    %1727 = vmatprep.subr.bf16.mxu0 0
    %1728 = vmatpush1.bf16.msra.mxu0 %v1587
    %1729 = vmatprep.subr.bf16.mxu0 0
    %1730 = vmatpush1.bf16.msra.mxu0 %v1592
    %1731 = vmatprep.subr.bf16.mxu0 0
    %1732 = vmatpush1.bf16.msra.mxu0 0
    %1733 = vmatprep.subr.bf16.mxu0 0
    %1734 = vmatpush1.bf16.msra.mxu0 0
    %1735 = vmatprep.subr.bf16.mxu0 0
    %1736 = vmatpush1.bf16.msra.mxu0 0
    %1737 = vmatprep.subr.bf16.mxu0 0
    %1738 = vmatpush1.bf16.msra.mxu0 0
    %1739 = vmatprep.subr.bf16.mxu0 0
    %1740 = vmatpush1.bf16.msra.mxu0 0
    %1741 = vmatprep.subr.bf16.mxu0 0
    %1742 = vmatpush1.bf16.msra.mxu0 0
    %1743 = vmatprep.subr.bf16.mxu0 0
    %1744 = vmatpush1.bf16.msra.mxu0 0
    %1745 = vmatprep.subr.bf16.mxu0 0
    %1746 = vmatpush1.bf16.msra.mxu0 0
    %1747 = vmatprep.mubr.bf16.mxu0 0
    %1748 = vmatmul.mubr.bf16.gmra.mrb[0].mxu0 %v1398
    %v1749 = vpop.f32.mrb[0].mxu0
    %v1750 = vadd.f32 %v1419, %v1749
    %v1751 = vpop.f32.mrb[0].mxu0
    %v1752 = vpop.f32.mrb[0].mxu0
    %v1753 = vpop.f32.mrb[0].mxu0
    %1754 = vdwg.mxu0
    %v1755 = vadd.f32 %v1393, %v1750
    %v1756 = vsel %vm845, %v1755, inf
    %1757 = vmin.xlane.f32.xlu0 %v1756
    %v1758 = vpop.xlane.xlu0 %1757
    %v1759 = vsub.f32 %v1755, %v1758
    %v1760 = vadd.f32 %v1759, 1e-15
    %v1761 = vsel %vm845, %v1760, -inf
    %1762 = vmax.xlane.f32.xlu0 %v1761
    %v1763 = vpop.xlane.xlu0 %1762
    %v1764 = vrcp.pop %v1763
    %v1765 = vmul.f32 %v1760, %v1764
    %v1766 = vmul.f32 %v1765, 3.0
    %v1767 = vfloor.f32 %v1766
    %v1768 = vceil.f32 %v1766
    %v1769 = vsub.f32 %v1766, %v1767
    %v1770 = vsub.f32 %v1768, %v1766
    %v1771 = vsel %vm845, %v1769, -inf
    %1772 = vmax.xlane.f32.xlu0 %v1771
    %v1773 = vpop.xlane.xlu0 %1772
    %v1774 = vsel %vm845, %v1770, -inf
    %1775 = vmax.xlane.f32.xlu0 %v1774
    %v1776 = vpop.xlane.xlu0 %1775
    %v1777 = vmax.f32 %v1773, %v1776
    %v1778 = vsub.f32 %v1769, %v1777
    %v1779 = vmul.f32 %v1778, 1.442695
    %v1780 = vpow.pop %v1779
    %v1781 = vsub.f32 %v1770, %v1777
    %v1782 = vmul.f32 %v1781, 1.442695
    %v1783 = vpow.pop %v1782
    %v1784 = vsel %vm845, %v1780, 0.0
    %1785 = vadd.xlane.f32.xlu0 %v1784
    %v1786 = vpop.xlane.xlu0 %1785
    %v1787 = vsel %vm845, %v1783, 0.0
    %1788 = vadd.xlane.f32.xlu0 %v1787
    %v1789 = vpop.xlane.xlu0 %1788
    %v1790 = vadd.f32 %v1786, %v1789
    %v1791 = vrcp.pop %v1790
    %v1792 = vmul.f32 1.0, %v1791
    %v1793 = vmul.f32 %v1780, %v1792
    %v1794 = vmul.f32 %v1783, %v1792
    %vm1795 = vcmp.eq.f32.partialorder %v1767, 0.0
    %v1796 = vsel %vm1795, %v1793, 0.0
    %vm1797 = vcmp.eq.f32.partialorder %v1768, 0.0
    %v1798 = vsel %vm1797, %v1794, 0.0
    %v1799 = vadd.f32 %v1796, %v1798
    %v1800 = vsel %vm845, %v1799, 0.0
    %1801 = vadd.xlane.f32.xlu0 %v1800
    %v1802 = vpop.xlane.xlu0 %1801
    %vm1803 = vcmp.eq.f32.partialorder %v1767, 1.0
    %v1804 = vsel %vm1803, %v1793, 0.0
    %vm1805 = vcmp.eq.f32.partialorder %v1768, 1.0
    %v1806 = vsel %vm1805, %v1794, 0.0
    %v1807 = vadd.f32 %v1804, %v1806
    %v1808 = vsel %vm845, %v1807, 0.0
    %1809 = vadd.xlane.f32.xlu0 %v1808
    %v1810 = vpop.xlane.xlu0 %1809
    %vm1811 = vcmp.eq.f32.partialorder %v1767, 2.0
    %v1812 = vsel %vm1811, %v1793, 0.0
    %vm1813 = vcmp.eq.f32.partialorder %v1768, 2.0
    %v1814 = vsel %vm1813, %v1794, 0.0
    %v1815 = vadd.f32 %v1812, %v1814
    %v1816 = vsel %vm845, %v1815, 0.0
    %1817 = vadd.xlane.f32.xlu0 %v1816
    %v1818 = vpop.xlane.xlu0 %1817
    %vm1819 = vcmp.eq.f32.partialorder %v1767, 3.0
    %v1820 = vsel %vm1819, %v1793, 0.0
    %vm1821 = vcmp.eq.f32.partialorder %v1768, 3.0
    %v1822 = vsel %vm1821, %v1794, 0.0
    %v1823 = vadd.f32 %v1820, %v1822
    %v1824 = vsel %vm845, %v1823, 0.0
    %1825 = vadd.xlane.f32.xlu0 %v1824
    %v1826 = vpop.xlane.xlu0 %1825
    %v1827 = vsub.f32 0.0, %v1311
    %v1828 = vmul.f32 %v1827, 1.442695
    %v1829 = vpow.pop %v1828
    %v1830 = vadd.f32 %v1829, 1.0
    %v1831 = vrcp.pop %v1830
    %v1832 = vmul.f32 1.0, %v1831
    %v1833 = vmul.f32 %v1802, %v1832
    %v1834 = vsub.f32 0.0, %v1313
    %v1835 = vmul.f32 %v1834, 1.442695
    %v1836 = vpow.pop %v1835
    %v1837 = vadd.f32 %v1836, 1.0
    %v1838 = vrcp.pop %v1837
    %v1839 = vmul.f32 1.0, %v1838
    %v1840 = vmul.f32 %v1810, %v1839
    %v1841 = vadd.f32 %v1833, %v1840
    %v1842 = vsub.f32 0.0, %v1352
    %v1843 = vmul.f32 %v1842, 1.442695
    %v1844 = vpow.pop %v1843
    %v1845 = vadd.f32 %v1844, 1.0
    %v1846 = vrcp.pop %v1845
    %v1847 = vmul.f32 1.0, %v1846
    %v1848 = vmul.f32 %v1818, %v1847
    %v1849 = vadd.f32 %v1841, %v1848
    %v1850 = vsub.f32 0.0, %v1354
    %v1851 = vmul.f32 %v1850, 1.442695
    %v1852 = vpow.pop %v1851
    %v1853 = vadd.f32 %v1852, 1.0
    %v1854 = vrcp.pop %v1853
    %v1855 = vmul.f32 1.0, %v1854
    %v1856 = vmul.f32 %v1826, %v1855
    %v1857 = vadd.f32 %v1849, %v1856
    %v1858 = vsub.f32 0.0, %v1668
    %v1859 = vmul.f32 %v1858, 1.442695
    %v1860 = vpow.pop %v1859
    %v1861 = vadd.f32 %v1860, 1.0
    %v1862 = vrcp.pop %v1861
    %v1863 = vmul.f32 1.0, %v1862
    %v1864 = vmul.f32 %v1802, %v1863
    %v1865 = vsub.f32 0.0, %v1670
    %v1866 = vmul.f32 %v1865, 1.442695
    %v1867 = vpow.pop %v1866
    %v1868 = vadd.f32 %v1867, 1.0
    %v1869 = vrcp.pop %v1868
    %v1870 = vmul.f32 1.0, %v1869
    %v1871 = vmul.f32 %v1810, %v1870
    %v1872 = vadd.f32 %v1864, %v1871
    %v1873 = vsub.f32 0.0, %v1709
    %v1874 = vmul.f32 %v1873, 1.442695
    %v1875 = vpow.pop %v1874
    %v1876 = vadd.f32 %v1875, 1.0
    %v1877 = vrcp.pop %v1876
    %v1878 = vmul.f32 1.0, %v1877
    %v1879 = vmul.f32 %v1818, %v1878
    %v1880 = vadd.f32 %v1872, %v1879
    %v1881 = vsub.f32 0.0, %v1711
    %v1882 = vmul.f32 %v1881, 1.442695
    %v1883 = vpow.pop %v1882
    %v1884 = vadd.f32 %v1883, 1.0
    %v1885 = vrcp.pop %v1884
    %v1886 = vmul.f32 1.0, %v1885
    %v1887 = vmul.f32 %v1826, %v1886
    %v1888 = vadd.f32 %v1880, %v1887
    %v1889 = vld [vmem:[%s1] sm:$0xf]
    %v1890 = vld [vmem:[%s1 + $0x8] sm:$0xf]
    %v1893 = vunpack.c.l.s4 1966171168
    %v1894 = vunpack.c.0.s8 %v1893
    %v1895 = vlaneseq
    %v1896 = vshrl.u32 %v1895, 7
    %v1897 = vsub.s32 %v1894, %v1896
    %v1898 = vrot.slane %v1857, %v1897
    %v1899 = vcombine.high %v1898, %v1898
    %v1901 = vunpack.c.l.s4 1966171168
    %v1902 = vunpack.c.0.s8 %v1901
    %v1903 = vlaneseq
    %v1904 = vshrl.u32 %v1903, 7
    %v1905 = vsub.s32 %v1902, %v1904
    %v1906 = vrot.slane %v1898, %v1905
    %v1908 = vunpack.c.l.s4 1966171168
    %v1909 = vunpack.c.0.s8 %v1908
    %v1910 = vlaneseq
    %v1911 = vshrl.u32 %v1910, 7
    %v1912 = vsub.s32 %v1909, %v1911
    %v1913 = vrot.slane %v1899, %v1912
    %v1914 = vlaneseq
    %v1915 = vshrl.u32 %v1914, 7
    %v1916 = vsub.s32 0, %v1915
    %v1917 = vrot.slane %v1906, %v1916
    %v1918 = vlaneseq
    %v1919 = vshrl.u32 %v1918, 7
    %v1920 = vsub.s32 0, %v1919
    %v1921 = vrot.slane %v1913, %v1920
    %v1924 = vmul.f32 %v1889, %v1917
    %v1925 = vmul.f32 %v1890, %v1921
    %1926 = vst [vmem:[#allocation2] sm:$0xf] %v1924
    %1927 = vst [vmem:[#allocation2 + $0x8] sm:$0xf] %v1925
    %v1928 = vld [vmem:[%s1 + $0x4] sm:$0xf]
    %v1929 = vld [vmem:[%s1 + $0xc] sm:$0xf]
    %v1932 = vunpack.c.l.s4 1966171168
    %v1933 = vunpack.c.0.s8 %v1932
    %v1934 = vlaneseq
    %v1935 = vshrl.u32 %v1934, 7
    %v1936 = vsub.s32 %v1933, %v1935
    %v1937 = vrot.slane %v1888, %v1936
    %v1938 = vcombine.high %v1937, %v1937
    %v1940 = vunpack.c.l.s4 1966171168
    %v1941 = vunpack.c.0.s8 %v1940
    %v1942 = vlaneseq
    %v1943 = vshrl.u32 %v1942, 7
    %v1944 = vsub.s32 %v1941, %v1943
    %v1945 = vrot.slane %v1937, %v1944
    %v1947 = vunpack.c.l.s4 1966171168
    %v1948 = vunpack.c.0.s8 %v1947
    %v1949 = vlaneseq
    %v1950 = vshrl.u32 %v1949, 7
    %v1951 = vsub.s32 %v1948, %v1950
    %v1952 = vrot.slane %v1938, %v1951
    %v1953 = vlaneseq
    %v1954 = vshrl.u32 %v1953, 7
    %v1955 = vsub.s32 0, %v1954
    %v1956 = vrot.slane %v1945, %v1955
    %v1957 = vlaneseq
    %v1958 = vshrl.u32 %v1957, 7
    %v1959 = vsub.s32 0, %v1958
    %v1960 = vrot.slane %v1952, %v1959
    %v1963 = vmul.f32 %v1928, %v1956
    %v1964 = vmul.f32 %v1929, %v1960
    %1965 = vst [vmem:[#allocation2 + $0x4] sm:$0xf] %v1963
    %1966 = vst [vmem:[#allocation2 + $0xc] sm:$0xf] %v1964
    // Predicated region
    $region18: #{tpu_custom_call.1} parent=1 // pred_check
      _
    $region19: #{tpu_custom_call.1} parent=1 // pred_check_branch
      %1968 = sbr.rel (0) target = $region21
    $region20: #{tpu_custom_call.1} parent=1 // pred_region
      %s1970 = ssub.s32 256, 256
      %1971 = vsyncadd [#allocation3], %s1970
      %s1972 = sshll.u32 [#allocation2], 4
      %s1973 = int_to_ptr.vmem [resolvable:$true] %s1972
      %1978 = dma.vmem_to_hbm [thread:$0]  %s1973, 256, %s4, [#allocation3], 128, 128, 8
    $region21: #{tpu_custom_call.1} parent=1 // pred_fallthru
      _
    // Predicated region
    $region22: #{tpu_custom_call.1} parent=1 // pred_check
      _
    $region23: #{tpu_custom_call.1} parent=1 // pred_check_branch
      %1980 = sbr.rel (0) target = $region25
    $region24: #{tpu_custom_call.1} parent=1 // pred_region
      %1981 = dma.done [#allocation3], 256
    $region25: #{tpu_custom_call.1} parent=1 // pred_fallthru
      _
    %1982 = vsyncpa [#allocation3], 1

</llo_original>
